<compile_context>
chip_gen: v7x
topology: tpu7x:2x2x1
jax: 0.10.0
libtpu: 0.0.40
codegen_flags: <defaults>
</compile_context>

<pallas_src>
import functools
from typing import NamedTuple

import jax
import jax.numpy as jnp
from jax.experimental import pallas as pl
from jax.experimental.pallas import tpu as pltpu

_EPS = 1e-8  # F.cosine_similarity default eps


# ---------------------------------------------------------------------------
# Kernel
# ---------------------------------------------------------------------------
def _clip_sim_kernel(img0_ref, img1_ref, txt0_ref, txt1_ref, w_img_ref,
                     b_img_ref, w_txt_ref, out_ref, acc0_ref, acc1_ref, *,
                     batch):
    """Grid: (E column blocks ["parallel"], K tiles of D_img ["arbitrary"]).

    Streams the image-projection weight through the MXU in K tiles,
    accumulating both image feature slices in f32 VMEM scratch.  On the last
    K step it projects the (tiny) text inputs and emits the 10 partial Gram
    sums this E-slice contributes to the four cosine similarities.
    """
    k = pl.program_id(1)

    @pl.when(k == 0)
    def _():
        acc0_ref[...] = jnp.zeros_like(acc0_ref)
        acc1_ref[...] = jnp.zeros_like(acc1_ref)

    # Weight-stream matmuls (bf16 inputs by default, f32 accumulation).
    acc0_ref[...] += jnp.dot(img0_ref[...], w_img_ref[...],
                             preferred_element_type=jnp.float32)
    acc1_ref[...] += jnp.dot(img1_ref[...], w_img_ref[...],
                             preferred_element_type=jnp.float32)

    @pl.when(k == pl.num_programs(1) - 1)
    def _():
        bias = b_img_ref[...]                       # folded pixel-norm bias (f32)
        fi0 = acc0_ref[...] + bias                  # [B, Et] raw image features
        fi1 = acc1_ref[...] + bias
        ft0 = jnp.dot(txt0_ref[...], w_txt_ref[...],
                      preferred_element_type=jnp.float32)    # [B, Et]
        ft1 = jnp.dot(txt1_ref[...], w_txt_ref[...],
                      preferred_element_type=jnp.float32)

        # Partial Gram sums over this E-slice:
        #   0..3: ||fi0||^2, ||fi1||^2, ||ft0||^2, ||ft1||^2
        #   4..9: fi0.ft0, fi1.ft1, fi0.fi1, fi0.ft1, fi1.ft0, ft0.ft1
        # The wrapper sums them over E-slices and forms the cosines, so each
        # TensorCore (v7x) only touches its own disjoint slice of W_img.
        pairs = ((fi0, fi0), (fi1, fi1), (ft0, ft0), (ft1, ft1),
                 (fi0, ft0), (fi1, ft1), (fi0, fi1),
                 (fi0, ft1), (fi1, ft0), (ft0, ft1))
        rows = [jnp.sum(a * b, axis=-1).reshape(1, batch) for a, b in pairs]
        # Single store of the whole block (no per-row masked stores).
        out_ref[...] = jnp.concatenate(rows, axis=0).reshape(1, 10, batch)


# ---------------------------------------------------------------------------
# Planning / weight preparation (module-init equivalent)
# ---------------------------------------------------------------------------
class ClipSimParams(NamedTuple):
    w_img: jax.Array      # [D_pad, E] folded + zero-padded, weight_dtype
    b_img: jax.Array      # [1, E]  f32 (folded pixel-normalization bias)
    w_txt: jax.Array      # [D_txt, E] f32
    d_img: int            # original (unpadded) image feature dim
    d_pad: int            # padded image feature dim (multiple of tk)
    tk: int               # K tile
    ne: int               # number of E column blocks (parallel grid axis)
    vmem_limit: int       # bytes, passed to CompilerParams


def _default_vmem_limit():
    """Generation-aware VMEM budget (v7x has 64 MiB vs 128 MiB on v5e/v6e)."""
    try:
        cap = pltpu.get_tpu_info().vmem_capacity_bytes
    except Exception:
        cap = 64 << 20
    return int(min(cap // 2, 48 << 20))


def _pick_tk(d_img, e_t, batch_hint, itemsize, vmem_limit):
    """Largest K tile (multiple of 128) whose double-buffered weight + image
    tiles fit in ~60% of the VMEM budget (rest: residents, scratch, output)."""
    budget = int(vmem_limit * 0.6)
    per_tk = (2 * e_t + 4 * batch_hint) * itemsize   # 2x W tile + 2x2 img tiles
    tk = max((budget // per_tk) // 128 * 128, 128)
    d_ceil = -(-d_img // 128) * 128
    return min(tk, d_ceil)


def prepare_clip_weights(w_img, w_txt, mean, std, spatial_hw, *,
                         weight_dtype=jnp.bfloat16, tk=None, ne=None,
                         batch_hint=16):
    """One-time transform (module __init__ equivalent).

    Folds CLIP pixel mean/std into the image projection:
        ((img - mean) / std) @ W == img @ W' + b,
        W' = diag(1/std_flat) @ W,  b = -(mean_flat/std_flat) @ W.
    Casts W' to `weight_dtype` (bf16 default: ~2x less HBM traffic on the
    dominant stream) and zero-pads it so tk need not divide D_img.
    """
    d_img, e = w_img.shape
    inv_std_flat = jnp.repeat(1.0 / std, spatial_hw).astype(jnp.float32)   # [D_img]
    mean_flat = jnp.repeat(mean, spatial_hw).astype(jnp.float32)           # [D_img]
    w_img_folded = (w_img * inv_std_flat[:, None]).astype(weight_dtype)
    # Bias fold uses the ORIGINAL (unpadded, f32) weight/mean/std layout.
    b_img = (-(mean_flat * inv_std_flat) @ w_img).reshape(1, -1).astype(jnp.float32)

    if ne is None:
        # >=2 E blocks lets v7x's two TensorCores each stream a disjoint half
        # of W_img; ~free on v5e/v6e (single TensorCore).
        ne = 2 if e % 256 == 0 else 1
    assert e % ne == 0 and (ne == 1 or (e // ne) % 128 == 0), (e, ne)
    e_t = e // ne

    vmem_limit = _default_vmem_limit()
    if tk is None:
        tk = _pick_tk(d_img, e_t, batch_hint,
                      jnp.dtype(weight_dtype).itemsize, vmem_limit)
    assert tk % 128 == 0, tk

    nk = -(-d_img // tk)
    d_pad = nk * tk
    if d_pad != d_img:
        # Zero rows contribute 0 to the f32 accumulator -> exact.
        w_img_folded = jnp.pad(w_img_folded, ((0, d_pad - d_img), (0, 0)))

    return ClipSimParams(w_img_folded, b_img, w_txt.astype(jnp.float32),
                         d_img, d_pad, tk, ne, vmem_limit)


# ---------------------------------------------------------------------------
# Forward
# ---------------------------------------------------------------------------
def _combine_partials(partials):
    """Combine per-E-slice Gram partials ([NE, 10, B]) into the four cosines.

    Features are implicitly L2-normalized (CLIP-style, no eps: an exactly-zero
    feature row yields NaN, matching features/norm in the reference module);
    eps clamping only matters for the direction vectors, as in
    F.cosine_similarity.
    """
    g = jnp.sum(partials.astype(jnp.float32), axis=0)     # [10, B]
    n_i0, n_i1 = jnp.sqrt(g[0]), jnp.sqrt(g[1])
    n_t0, n_t1 = jnp.sqrt(g[2]), jnp.sqrt(g[3])
    c_i0t0 = g[4] / (n_i0 * n_t0)
    c_i1t1 = g[5] / (n_i1 * n_t1)
    c_i0i1 = g[6] / (n_i0 * n_i1)
    c_i0t1 = g[7] / (n_i0 * n_t1)
    c_i1t0 = g[8] / (n_i1 * n_t0)
    c_t0t1 = g[9] / (n_t0 * n_t1)

    sim_0 = c_i0t0
    sim_1 = c_i1t1
    sim_image = c_i0i1
    # d_i = fi1^ - fi0^, d_t = ft1^ - ft0^  (unit-norm features)
    d_dot = c_i1t1 - c_i1t0 - c_i0t1 + c_i0t0
    nd_i = jnp.sqrt(jnp.maximum(2.0 - 2.0 * c_i0i1, 0.0))
    nd_t = jnp.sqrt(jnp.maximum(2.0 - 2.0 * c_t0t1, 0.0))
    sim_direction = d_dot / (jnp.maximum(nd_i, _EPS) * jnp.maximum(nd_t, _EPS))
    return sim_0, sim_1, sim_direction, sim_image


def clip_similarity_forward(image_0, image_1, text_emb_0, text_emb_1, params):
    """image_*: [B, C, H, W] float32 (NCHW).  text_emb_*: [B, D_txt] float32.
    `params` comes from prepare_clip_weights().
    Returns (sim_0, sim_1, sim_direction, sim_image), each shape [B]."""
    B, C, H, W = image_0.shape
    d_img = C * H * W
    assert d_img == params.d_img, (d_img, params.d_img)
    D_txt = text_emb_0.shape[1]
    assert D_txt == params.w_txt.shape[0]
    E = params.b_img.shape[1]
    tk, ne, d_pad = params.tk, params.ne, params.d_pad
    e_t = E // ne
    nk = d_pad // tk

    wdt = params.w_img.dtype
    img0 = image_0.reshape(B, d_img).astype(wdt)
    img1 = image_1.reshape(B, d_img).astype(wdt)
    if d_pad != d_img:
        pad = ((0, 0), (0, d_pad - d_img))
        img0 = jnp.pad(img0, pad)
        img1 = jnp.pad(img1, pad)
    txt0 = text_emb_0.astype(jnp.float32)
    txt1 = text_emb_1.astype(jnp.float32)

    kernel = functools.partial(_clip_sim_kernel, batch=B)

    partials = pl.pallas_call(
        kernel,
        out_shape=jax.ShapeDtypeStruct((ne, 10, B), jnp.float32),
        grid_spec=pltpu.PrefetchScalarGridSpec(
            num_scalar_prefetch=0,
            grid=(ne, nk),
            in_specs=[
                # K-streamed activations (double-buffered by default).
                pl.BlockSpec((B, tk), lambda e, k: (0, k)),
                pl.BlockSpec((B, tk), lambda e, k: (0, k)),
                # Residents: single-buffered to free VMEM for bigger tk.
                pl.BlockSpec((B, D_txt), lambda e, k: (0, 0),
                             pipeline_mode=pl.Buffered(1)),
                pl.BlockSpec((B, D_txt), lambda e, k: (0, 0),
                             pipeline_mode=pl.Buffered(1)),
                # The dominant stream: W_img K x E tiles.
                pl.BlockSpec((tk, e_t), lambda e, k: (k, e)),
                pl.BlockSpec((1, e_t), lambda e, k: (0, e),
                             pipeline_mode=pl.Buffered(1)),
                pl.BlockSpec((D_txt, e_t), lambda e, k: (0, e),
                             pipeline_mode=pl.Buffered(1)),
            ],
            out_specs=pl.BlockSpec((1, 10, B), lambda e, k: (e, 0, 0)),
            scratch_shapes=[pltpu.VMEM((B, e_t), jnp.float32),
                            pltpu.VMEM((B, e_t), jnp.float32)],
        ),
        compiler_params=pltpu.CompilerParams(
            dimension_semantics=("parallel", "arbitrary"),
            vmem_limit_bytes=params.vmem_limit),
    )(img0, img1, txt0, txt1, params.w_img, params.b_img, params.w_txt)

    return _combine_partials(partials)


# ---------------------------------------------------------------------------
# Demo / self-test
# ---------------------------------------------------------------------------
if __name__ == "__main__":
    # Small, CLIP-consistent shapes: RGB images, modest spatial size,
    # embedding dim 256, text-token-embedding dim 32.
    B, C, H, W = 2, 3, 16, 16
    D_img = C * H * W          # 768
    D_txt = 32
    E = 256

    key = jax.random.PRNGKey(0)
    k_i0, k_i1, k_t0, k_t1, k_wi, k_wt = jax.random.split(key, 6)

    image_0 = jax.random.uniform(k_i0, (B, C, H, W), jnp.float32)  # pixels in [0,1]
    image_1 = jax.random.uniform(k_i1, (B, C, H, W), jnp.float32)
    text_emb_0 = jax.random.normal(k_t0, (B, D_txt), jnp.float32)
    text_emb_1 = jax.random.normal(k_t1, (B, D_txt), jnp.float32)

    # Deterministic synthetic encoder weights (stand-ins for CLIP encoders).
    w_img = jax.random.normal(k_wi, (D_img, E), jnp.float32) / jnp.sqrt(D_img)
    w_txt = jax.random.normal(k_wt, (D_txt, E), jnp.float32) / jnp.sqrt(D_txt)

    # Registered buffers from the module.
    mean = jnp.array([0.48145466, 0.4578275, 0.40821073], jnp.float32)
    std = jnp.array([0.26862954, 0.26130258, 0.27577711], jnp.float32)

    # Pure-JAX reference (original unfused / unfolded f32 formulation).
    def ref():
        mean_flat = jnp.repeat(mean, H * W)[None, :]
        std_flat = jnp.repeat(std, H * W)[None, :]
        x0 = (image_0.reshape(B, D_img) - mean_flat) / std_flat
        x1 = (image_1.reshape(B, D_img) - mean_flat) / std_flat
        fi0, fi1 = x0 @ w_img, x1 @ w_img
        ft0, ft1 = text_emb_0 @ w_txt, text_emb_1 @ w_txt
        nrm = lambda f: f / jnp.linalg.norm(f, axis=1, keepdims=True)
        fi0, fi1, ft0, ft1 = nrm(fi0), nrm(fi1), nrm(ft0), nrm(ft1)

        def cs(a, b):
            na = jnp.maximum(jnp.linalg.norm(a, axis=1), 1e-8)
            nb = jnp.maximum(jnp.linalg.norm(b, axis=1), 1e-8)
            return jnp.sum(a * b, axis=1) / (na * nb)

        return cs(fi0, ft0), cs(fi1, ft1), cs(fi1 - fi0, ft1 - ft0), cs(fi0, fi1)

    refs = ref()

    # Default path: bf16 weight stream, tk=512 (2 K-steps + zero padding of
    # D_img=768 -> 1024 exercised), ne=2 (E-parallel axis exercised).
    params_bf16 = prepare_clip_weights(w_img, w_txt, mean, std, H * W,
                                       tk=512, ne=2)
    outs_bf16 = clip_similarity_forward(image_0, image_1,
                                        text_emb_0, text_emb_1, params_bf16)
    outs_bf16 = jax.block_until_ready(outs_bf16)

    # Exact-parity path: f32 weight stream, tk=256 (3 K-steps, no padding), ne=1.
    params_f32 = prepare_clip_weights(w_img, w_txt, mean, std, H * W,
                                      weight_dtype=jnp.float32, tk=256, ne=1)
    outs_f32 = clip_similarity_forward(image_0, image_1,
                                       text_emb_0, text_emb_1, params_f32)
    outs_f32 = jax.block_until_ready(outs_f32)

    for o, r in zip(outs_f32, refs):
        # Weight folding, K-tiled accumulation and the Gram reformulation
        # legally reassociate the fp32 sums.
        assert jnp.allclose(o, r, atol=5e-4), ("f32", o, r)
    for o, r in zip(outs_bf16, refs):
        # bf16 weight/activation stream (f32 accumulation) -> looser tolerance.
        assert jnp.allclose(o, r, atol=7.5e-2), ("bf16", o, r)

    print("KERNEL_OK")
</pallas_src>

<mosaic_0001>
module attributes {stable_mosaic.version = 11 : i64} {
  func.func @_clip_sim_kernel(%arg0: i32, %arg1: i32, %arg2: memref<2x512xbf16, #tpu.memory_space<vmem>>, %arg3: memref<2x512xbf16, #tpu.memory_space<vmem>>, %arg4: memref<2x32xf32, #tpu.memory_space<vmem>>, %arg5: memref<2x32xf32, #tpu.memory_space<vmem>>, %arg6: memref<512x128xbf16, #tpu.memory_space<vmem>>, %arg7: memref<1x128xf32, #tpu.memory_space<vmem>>, %arg8: memref<32x128xf32, #tpu.memory_space<vmem>>, %arg9: memref<1x10x2xf32, #tpu.memory_space<vmem>>, %arg10: memref<2x128xf32, #tpu.memory_space<vmem>>, %arg11: memref<2x128xf32, #tpu.memory_space<vmem>>) attributes {dimension_semantics = [#tpu.dimension_semantics<parallel>, #tpu.dimension_semantics<arbitrary>], iteration_bounds = array<i64: 2, 2>, scalar_prefetch = 0 : i64, scratch_operands = 2 : i64, tpu.core_type = #tpu.core_type<tc>, window_params = [{transform_indices = @transform_0, window_bounds = array<i64: 2, 512>}, {transform_indices = @transform_1, window_bounds = array<i64: 2, 512>}, {pipeline_mode = #tpu.pipeline_mode<synchronous>, transform_indices = @transform_2, window_bounds = array<i64: 2, 32>}, {pipeline_mode = #tpu.pipeline_mode<synchronous>, transform_indices = @transform_3, window_bounds = array<i64: 2, 32>}, {transform_indices = @transform_4, window_bounds = array<i64: 512, 128>}, {pipeline_mode = #tpu.pipeline_mode<synchronous>, transform_indices = @transform_5, window_bounds = array<i64: 1, 128>}, {pipeline_mode = #tpu.pipeline_mode<synchronous>, transform_indices = @transform_6, window_bounds = array<i64: 32, 128>}, {transform_indices = @transform_7, window_bounds = array<i64: 1, 10, 2>}]} {
    %c0_i32 = arith.constant 0 : i32
    %0 = arith.cmpi eq, %arg1, %c0_i32 : i32
    %1 = arith.extui %0 : i1 to i32
    %c0_i32_0 = arith.constant 0 : i32
    %2 = arith.cmpi ne, %1, %c0_i32_0 : i32
    scf.if %2 {
      %cst_18 = arith.constant 0.000000e+00 : f32
      %18 = vector.broadcast %cst_18 : f32 to vector<2x128xf32>
      %c0_19 = arith.constant 0 : index
      %c0_20 = arith.constant 0 : index
      %19 = vector.load %arg10[%c0_19, %c0_20] : memref<2x128xf32, #tpu.memory_space<vmem>>, vector<2x128xf32>
      tpu.vector_store %arg10[%c0_19, %c0_20], %18 {strides = array<i32>} : memref<2x128xf32, #tpu.memory_space<vmem>>, vector<2x128xf32>,
      %cst_21 = arith.constant 0.000000e+00 : f32
      %20 = vector.broadcast %cst_21 : f32 to vector<2x128xf32>
      %c0_22 = arith.constant 0 : index
      %c0_23 = arith.constant 0 : index
      %21 = vector.load %arg11[%c0_22, %c0_23] : memref<2x128xf32, #tpu.memory_space<vmem>>, vector<2x128xf32>
      tpu.vector_store %arg11[%c0_22, %c0_23], %20 {strides = array<i32>} : memref<2x128xf32, #tpu.memory_space<vmem>>, vector<2x128xf32>,
    } else {
    }
    %c0 = arith.constant 0 : index
    %c0_1 = arith.constant 0 : index
    %3 = vector.load %arg10[%c0, %c0_1] : memref<2x128xf32, #tpu.memory_space<vmem>>, vector<2x128xf32>
    %c0_2 = arith.constant 0 : index
    %c0_3 = arith.constant 0 : index
    %4 = vector.load %arg2[%c0_2, %c0_3] : memref<2x512xbf16, #tpu.memory_space<vmem>>, vector<2x512xbf16>
    %c0_4 = arith.constant 0 : index
    %c0_5 = arith.constant 0 : index
    %5 = vector.load %arg6[%c0_4, %c0_5] : memref<512x128xbf16, #tpu.memory_space<vmem>>, vector<512x128xbf16>
    %cst = arith.constant dense<0.000000e+00> : vector<2x128xf32>
    %6 = tpu.matmul %4, %5, %cst {dimension_numbers = #tpu.dot_dimension_numbers<[1], [0], [0], [1], [0, 0, 1, 1], [], []>} : vector<2x512xbf16>, vector<512x128xbf16>, vector<2x128xf32> -> vector<2x128xf32>
    %7 = arith.addf %3, %6 : vector<2x128xf32>
    %c0_6 = arith.constant 0 : index
    %c0_7 = arith.constant 0 : index
    %8 = vector.load %arg10[%c0_6, %c0_7] : memref<2x128xf32, #tpu.memory_space<vmem>>, vector<2x128xf32>
    tpu.vector_store %arg10[%c0_6, %c0_7], %7 {strides = array<i32>} : memref<2x128xf32, #tpu.memory_space<vmem>>, vector<2x128xf32>,
    %c0_8 = arith.constant 0 : index
    %c0_9 = arith.constant 0 : index
    %9 = vector.load %arg11[%c0_8, %c0_9] : memref<2x128xf32, #tpu.memory_space<vmem>>, vector<2x128xf32>
    %c0_10 = arith.constant 0 : index
    %c0_11 = arith.constant 0 : index
    %10 = vector.load %arg3[%c0_10, %c0_11] : memref<2x512xbf16, #tpu.memory_space<vmem>>, vector<2x512xbf16>
    %c0_12 = arith.constant 0 : index
    %c0_13 = arith.constant 0 : index
    %11 = vector.load %arg6[%c0_12, %c0_13] : memref<512x128xbf16, #tpu.memory_space<vmem>>, vector<512x128xbf16>
    %cst_14 = arith.constant dense<0.000000e+00> : vector<2x128xf32>
    %12 = tpu.matmul %10, %11, %cst_14 {dimension_numbers = #tpu.dot_dimension_numbers<[1], [0], [0], [1], [0, 0, 1, 1], [], []>} : vector<2x512xbf16>, vector<512x128xbf16>, vector<2x128xf32> -> vector<2x128xf32>
    %13 = arith.addf %9, %12 : vector<2x128xf32>
    %c0_15 = arith.constant 0 : index
    %c0_16 = arith.constant 0 : index
    %14 = vector.load %arg11[%c0_15, %c0_16] : memref<2x128xf32, #tpu.memory_space<vmem>>, vector<2x128xf32>
    tpu.vector_store %arg11[%c0_15, %c0_16], %13 {strides = array<i32>} : memref<2x128xf32, #tpu.memory_space<vmem>>, vector<2x128xf32>,
    %c1_i32 = arith.constant 1 : i32
    %15 = arith.cmpi eq, %arg1, %c1_i32 : i32
    %16 = arith.extui %15 : i1 to i32
    %c0_i32_17 = arith.constant 0 : i32
    %17 = arith.cmpi ne, %16, %c0_i32_17 : i32
    scf.if %17 {
      %c0_18 = arith.constant 0 : index
      %c0_19 = arith.constant 0 : index
      %18 = vector.load %arg7[%c0_18, %c0_19] : memref<1x128xf32, #tpu.memory_space<vmem>>, vector<1x128xf32>
      %c0_20 = arith.constant 0 : index
      %c0_21 = arith.constant 0 : index
      %19 = vector.load %arg10[%c0_20, %c0_21] : memref<2x128xf32, #tpu.memory_space<vmem>>, vector<2x128xf32>
      %20 = vector.broadcast %18 : vector<1x128xf32> to vector<2x128xf32>
      %21 = arith.addf %19, %20 : vector<2x128xf32>
      %c0_22 = arith.constant 0 : index
      %c0_23 = arith.constant 0 : index
      %22 = vector.load %arg11[%c0_22, %c0_23] : memref<2x128xf32, #tpu.memory_space<vmem>>, vector<2x128xf32>
      %23 = vector.broadcast %18 : vector<1x128xf32> to vector<2x128xf32>
      %24 = arith.addf %22, %23 : vector<2x128xf32>
      %c0_24 = arith.constant 0 : index
      %c0_25 = arith.constant 0 : index
      %25 = vector.load %arg4[%c0_24, %c0_25] : memref<2x32xf32, #tpu.memory_space<vmem>>, vector<2x32xf32>
      %c0_26 = arith.constant 0 : index
      %c0_27 = arith.constant 0 : index
      %26 = vector.load %arg8[%c0_26, %c0_27] : memref<32x128xf32, #tpu.memory_space<vmem>>, vector<32x128xf32>
      %cst_28 = arith.constant dense<0.000000e+00> : vector<2x128xf32>
      %27 = tpu.matmul %25, %26, %cst_28 {dimension_numbers = #tpu.dot_dimension_numbers<[1], [0], [0], [1], [0, 0, 1, 1], [], []>} : vector<2x32xf32>, vector<32x128xf32>, vector<2x128xf32> -> vector<2x128xf32>
      %c0_29 = arith.constant 0 : index
      %c0_30 = arith.constant 0 : index
      %28 = vector.load %arg5[%c0_29, %c0_30] : memref<2x32xf32, #tpu.memory_space<vmem>>, vector<2x32xf32>
      %c0_31 = arith.constant 0 : index
      %c0_32 = arith.constant 0 : index
      %29 = vector.load %arg8[%c0_31, %c0_32] : memref<32x128xf32, #tpu.memory_space<vmem>>, vector<32x128xf32>
      %cst_33 = arith.constant dense<0.000000e+00> : vector<2x128xf32>
      %30 = tpu.matmul %28, %29, %cst_33 {dimension_numbers = #tpu.dot_dimension_numbers<[1], [0], [0], [1], [0, 0, 1, 1], [], []>} : vector<2x32xf32>, vector<32x128xf32>, vector<2x128xf32> -> vector<2x128xf32>
      %31 = arith.mulf %21, %21 : vector<2x128xf32>
      %cst_34 = arith.constant dense<0.000000e+00> : vector<2xf32>
      %32 = vector.multi_reduction <add>, %31, %cst_34 [1] : vector<2x128xf32> to vector<2xf32>
      %33 = vector.shape_cast %32 : vector<2xf32> to vector<1x2xf32>
      %34 = arith.mulf %24, %24 : vector<2x128xf32>
      %cst_35 = arith.constant dense<0.000000e+00> : vector<2xf32>
      %35 = vector.multi_reduction <add>, %34, %cst_35 [1] : vector<2x128xf32> to vector<2xf32>
      %36 = vector.shape_cast %35 : vector<2xf32> to vector<1x2xf32>
      %37 = arith.mulf %27, %27 : vector<2x128xf32>
      %cst_36 = arith.constant dense<0.000000e+00> : vector<2xf32>
      %38 = vector.multi_reduction <add>, %37, %cst_36 [1] : vector<2x128xf32> to vector<2xf32>
      %39 = vector.shape_cast %38 : vector<2xf32> to vector<1x2xf32>
      %40 = arith.mulf %30, %30 : vector<2x128xf32>
      %cst_37 = arith.constant dense<0.000000e+00> : vector<2xf32>
      %41 = vector.multi_reduction <add>, %40, %cst_37 [1] : vector<2x128xf32> to vector<2xf32>
      %42 = vector.shape_cast %41 : vector<2xf32> to vector<1x2xf32>
      %43 = arith.mulf %21, %27 : vector<2x128xf32>
      %cst_38 = arith.constant dense<0.000000e+00> : vector<2xf32>
      %44 = vector.multi_reduction <add>, %43, %cst_38 [1] : vector<2x128xf32> to vector<2xf32>
      %45 = vector.shape_cast %44 : vector<2xf32> to vector<1x2xf32>
      %46 = arith.mulf %24, %30 : vector<2x128xf32>
      %cst_39 = arith.constant dense<0.000000e+00> : vector<2xf32>
      %47 = vector.multi_reduction <add>, %46, %cst_39 [1] : vector<2x128xf32> to vector<2xf32>
      %48 = vector.shape_cast %47 : vector<2xf32> to vector<1x2xf32>
      %49 = arith.mulf %21, %24 : vector<2x128xf32>
      %cst_40 = arith.constant dense<0.000000e+00> : vector<2xf32>
      %50 = vector.multi_reduction <add>, %49, %cst_40 [1] : vector<2x128xf32> to vector<2xf32>
      %51 = vector.shape_cast %50 : vector<2xf32> to vector<1x2xf32>
      %52 = arith.mulf %21, %30 : vector<2x128xf32>
      %cst_41 = arith.constant dense<0.000000e+00> : vector<2xf32>
      %53 = vector.multi_reduction <add>, %52, %cst_41 [1] : vector<2x128xf32> to vector<2xf32>
      %54 = vector.shape_cast %53 : vector<2xf32> to vector<1x2xf32>
      %55 = arith.mulf %24, %27 : vector<2x128xf32>
      %cst_42 = arith.constant dense<0.000000e+00> : vector<2xf32>
      %56 = vector.multi_reduction <add>, %55, %cst_42 [1] : vector<2x128xf32> to vector<2xf32>
      %57 = vector.shape_cast %56 : vector<2xf32> to vector<1x2xf32>
      %58 = arith.mulf %27, %30 : vector<2x128xf32>
      %cst_43 = arith.constant dense<0.000000e+00> : vector<2xf32>
      %59 = vector.multi_reduction <add>, %58, %cst_43 [1] : vector<2x128xf32> to vector<2xf32>
      %60 = vector.shape_cast %59 : vector<2xf32> to vector<1x2xf32>
      %61 = tpu.concatenate %33, %36, %39, %42, %45, %48, %51, %54, %57, %60 in 0 : vector<1x2xf32>, vector<1x2xf32>, vector<1x2xf32>, vector<1x2xf32>, vector<1x2xf32>, vector<1x2xf32>, vector<1x2xf32>, vector<1x2xf32>, vector<1x2xf32>, vector<1x2xf32> -> vector<10x2xf32>
      %62 = vector.shape_cast %61 : vector<10x2xf32> to vector<1x10x2xf32>
      %c0_44 = arith.constant 0 : index
      %c0_45 = arith.constant 0 : index
      %c0_46 = arith.constant 0 : index
      %63 = vector.load %arg9[%c0_44, %c0_45, %c0_46] : memref<1x10x2xf32, #tpu.memory_space<vmem>>, vector<1x10x2xf32>
      tpu.vector_store %arg9[%c0_44, %c0_45, %c0_46], %62 {strides = array<i32>} : memref<1x10x2xf32, #tpu.memory_space<vmem>>, vector<1x10x2xf32>,
    } else {
    }
    return
  }
  func.func @transform_0(%arg0: i32, %arg1: i32) -> (i32, i32) {
    %c0_i32 = arith.constant 0 : i32
    %c0_i32_0 = arith.constant 0 : i32
    return %c0_i32, %arg1 : i32, i32
  }
  func.func @transform_1(%arg0: i32, %arg1: i32) -> (i32, i32) {
    %c0_i32 = arith.constant 0 : i32
    %c0_i32_0 = arith.constant 0 : i32
    return %c0_i32, %arg1 : i32, i32
  }
  func.func @transform_2(%arg0: i32, %arg1: i32) -> (i32, i32) {
    %c0_i32 = arith.constant 0 : i32
    %c0_i32_0 = arith.constant 0 : i32
    %c0_i32_1 = arith.constant 0 : i32
    return %c0_i32, %c0_i32_0 : i32, i32
  }
  func.func @transform_3(%arg0: i32, %arg1: i32) -> (i32, i32) {
    %c0_i32 = arith.constant 0 : i32
    %c0_i32_0 = arith.constant 0 : i32
    %c0_i32_1 = arith.constant 0 : i32
    return %c0_i32, %c0_i32_0 : i32, i32
  }
  func.func @transform_4(%arg0: i32, %arg1: i32) -> (i32, i32) {
    %c0_i32 = arith.constant 0 : i32
    return %arg1, %arg0 : i32, i32
  }
  func.func @transform_5(%arg0: i32, %arg1: i32) -> (i32, i32) {
    %c0_i32 = arith.constant 0 : i32
    %c0_i32_0 = arith.constant 0 : i32
    return %c0_i32, %arg0 : i32, i32
  }
  func.func @transform_6(%arg0: i32, %arg1: i32) -> (i32, i32) {
    %c0_i32 = arith.constant 0 : i32
    %c0_i32_0 = arith.constant 0 : i32
    return %c0_i32, %arg0 : i32, i32
  }
  func.func @transform_7(%arg0: i32, %arg1: i32) -> (i32, i32, i32) {
    %c0_i32 = arith.constant 0 : i32
    %c0_i32_0 = arith.constant 0 : i32
    %c0_i32_1 = arith.constant 0 : i32
    return %arg0, %c0_i32, %c0_i32_0 : i32, i32, i32
  }
}

</mosaic_0001>

<llo_original>
// kernel: tpu_custom_call.1
$region0: #{tpu_custom_call.1}
  #allocation0 [shape = 'u32[]', space=smem, size = 0x4, offset = 0x4, fixed_abs, tag = 'smem constant byte address 0x4 - core index']
  #allocation1 [shape = 'u32[144,128]{1,0:T(1,128)}', space=vmem, size = 0x12000, scoped, tag = 'internal scratch']
  #allocation2 [shape = 'f32[2,128]{1,0:T(2,128)}', space=vmem, size = 0x400, scoped, tag = 'scratch operand']
  #allocation3 [shape = 'f32[2,128]{1,0:T(2,128)}', space=vmem, size = 0x400, scoped, tag = 'scratch operand']
  %s0 = inlined_call_operand.hbm [shape: bf16[2,1024], index: 0, kind: input, shape index: {}]
  %s1 = inlined_call_operand.hbm [shape: bf16[2,1024], index: 1, kind: input, shape index: {}]
  %s2 = inlined_call_operand.vmem [shape: f32[2,32], index: 2, kind: input, shape index: {}]
  %s3 = inlined_call_operand.vmem [shape: f32[2,32], index: 3, kind: input, shape index: {}]
  %s4 = inlined_call_operand.hbm [shape: bf16[1024,256], index: 4, kind: input, shape index: {}]
  %s5 = inlined_call_operand.vmem [shape: f32[1,256], index: 5, kind: input, shape index: {}]
  %s6 = inlined_call_operand.hbm [shape: f32[32,256], index: 6, kind: input, shape index: {}]
  %s7 = inlined_call_operand.vmem [shape: f32[2,10,2], index: 7, kind: output, shape index: {}]
  %s8 = sld [smem:[#allocation0]]
  $region85: #{tpu_custom_call.1} parent=0
    _
  %s10 = ssub.s32 1, %s8
  %s11 = scalar_select 0, %s10, %s8
  $region1: #{tpu_custom_call.1} parent=0
    #allocation4 [shape = 'u8[4096]{0}', space=vmem, size = 0x1000, scoped, tag = 'input window, operand 0']
    #allocation5 [shape = 's32[2]{0}', space=sflag, size = 0x8, scoped, tag = 'scoped memory for tpu_custom_call.1']
    #allocation6 [shape = 'u8[4096]{0}', space=vmem, size = 0x1000, scoped, tag = 'input window, operand 1']
    #allocation7 [shape = 's32[2]{0}', space=sflag, size = 0x8, scoped, tag = 'scoped memory for tpu_custom_call.1']
    #allocation8 [shape = 'u8[262144]{0}', space=vmem, size = 0x40000, scoped, tag = 'input window, operand 4']
    #allocation9 [shape = 'u8[16384]{0}', space=vmem, size = 0x4000, scoped, tag = 'input window, operand 6, single buffered']
    #allocation10 [shape = 's32[1]{0}', space=sflag, size = 0x4, scoped, tag = 'scoped memory for tpu_custom_call.1']
    %12 = vsyncpa [#allocation5], 0
    %s13 = scalar_lea.sflag [#allocation5], 1
    %14 = vsyncpa %s13, 0
    %15 = vsyncpa [#allocation7], 0
    %s16 = scalar_lea.sflag [#allocation7], 1
    %17 = vsyncpa %s16, 0
    %18 = vsyncpa [#allocation10], 0
    loop: start=0, step=1, limit=6
    $region2: #{tpu_custom_call.1} parent=1 // loop_pre_header
      _
    $region3: #{tpu_custom_call.1} parent=1 // loop_header
      %s20 = sphi 0, %s24
      %p21 = scmp.ge.s32.totalorder %s20, 6
      %s27 = sphi 0, %s39
      %s28 = sphi 0, %s35
      %s29 = sphi 0, %s27
      %s30 = sphi 0, %s28
      %s31 = sphi 0, %s29
      %s32 = sphi 0, %s30
      %s42 = sphi 0, %s44
      %s45 = sphi 0, %s42
      %s46 = sphi 0, %s45
      %s62 = sphi 0, %s46
      %s68 = sphi 0, %s70
      %s71 = sphi 0, %s68
      %s72 = sphi 0, %s71
      %s88 = sphi 0, %s72
      %s92 = sphi 0, %s92
      %s94 = sphi 0, %s92
      %s95 = sphi 0, %s94
      %s109 = sphi 0, %s95
      %s113 = sphi 0, %s113
      %s115 = sphi 0, %s113
      %s116 = sphi 0, %s115
      %s130 = sphi 0, %s116
      %s138 = sphi 0, %s140
      %s141 = sphi 0, %s138
      %s142 = sphi 0, %s141
      %s158 = sphi 0, %s142
      %s164 = sphi 0, %s166
      %s167 = sphi 0, %s164
      %s168 = sphi 0, %s167
      %s184 = sphi 0, %s168
      %s190 = sphi 0, %s192
      %s193 = sphi 0, %s190
      %s194 = sphi 0, %s193
      %s210 = sphi 0, %s194
      %s216 = sphi 0, %s218
      %s219 = sphi 0, %s216
      %s220 = sphi 0, %s219
      %s236 = sphi 0, %s220
    $region4: #{tpu_custom_call.1} parent=1 // loop_header_branch
      %23 = sbr.rel (%p21) target = $region8
    $region5: #{tpu_custom_call.1} parent=1 // loop_body
      %s25 = ssub.s32 %s20, 1
      %s26 = ssub.s32 %s20, 2
      %s33 = sadd.s32 1, %s28
      %p34 = scmp.ge.s32.totalorder %s33, 2
      %s35 = scalar_select %p34, 0, %s33
      %s36 = sadd.s32 1, %s27
      %s37 = scalar_select %p34, %s36, %s27
      %p38 = scmp.ge.s32.totalorder %s37, 2
      %s39 = scalar_select %p38, 0, %s37
      %s40 = ssub.s32 %s28, %s35
      %p41 = scmp.eq.s32.totalorder %s40, 0
      %s43 = sadd.s32 %s42, 1
      %s44 = scalar_select %p41, %s42, %s43
      %p47 = pneg %p41
      %p48 = scmp.eq.s32.totalorder %s20, 3
      %p49 = por %p47, %p48
      %p50 = scmp.ne.s32.totalorder %s42, %s45
      %p51 = scmp.eq.s32.totalorder %s20, 0
      %p52 = por %p50, %p51
      %p53 = scmp.ne.s32.totalorder %s42, %s45
      %p54 = scmp.eq.s32.totalorder %s25, 3
      %p55 = por %p53, %p54
      %p56 = scmp.ne.s32.totalorder %s45, %s46
      %p57 = scmp.eq.s32.totalorder %s25, 0
      %p58 = por %p56, %p57
      %p59 = scmp.ne.s32.totalorder %s45, %s46
      %p60 = scmp.eq.s32.totalorder %s26, 3
      %p61 = por %p59, %p60
      %p63 = scmp.ne.s32.totalorder %s46, %s62
      %p64 = scmp.eq.s32.totalorder %s26, 0
      %p65 = por %p63, %p64
      %s66 = ssub.s32 %s28, %s35
      %p67 = scmp.eq.s32.totalorder %s66, 0
      %s69 = sadd.s32 %s68, 1
      %s70 = scalar_select %p67, %s68, %s69
      %p73 = pneg %p67
      %p74 = scmp.eq.s32.totalorder %s20, 3
      %p75 = por %p73, %p74
      %p76 = scmp.ne.s32.totalorder %s68, %s71
      %p77 = scmp.eq.s32.totalorder %s20, 0
      %p78 = por %p76, %p77
      %p79 = scmp.ne.s32.totalorder %s68, %s71
      %p80 = scmp.eq.s32.totalorder %s25, 3
      %p81 = por %p79, %p80
      %p82 = scmp.ne.s32.totalorder %s71, %s72
      %p83 = scmp.eq.s32.totalorder %s25, 0
      %p84 = por %p82, %p83
      %p85 = scmp.ne.s32.totalorder %s71, %s72
      %p86 = scmp.eq.s32.totalorder %s26, 3
      %p87 = por %p85, %p86
      %p89 = scmp.ne.s32.totalorder %s72, %s88
      %p90 = scmp.eq.s32.totalorder %s26, 0
      %p91 = por %p89, %p90
      %s93 = sadd.s32 %s92, 1
      %p96 = scmp.eq.s32.totalorder %s20, 3
      %p97 = scmp.ne.s32.totalorder %s92, %s94
      %p98 = scmp.eq.s32.totalorder %s20, 0
      %p99 = por %p97, %p98
      %p100 = scmp.ne.s32.totalorder %s92, %s94
      %p101 = scmp.eq.s32.totalorder %s25, 3
      %p102 = por %p100, %p101
      %p103 = scmp.ne.s32.totalorder %s94, %s95
      %p104 = scmp.eq.s32.totalorder %s25, 0
      %p105 = por %p103, %p104
      %p106 = scmp.ne.s32.totalorder %s94, %s95
      %p107 = scmp.eq.s32.totalorder %s26, 3
      %p108 = por %p106, %p107
      %p110 = scmp.ne.s32.totalorder %s95, %s109
      %p111 = scmp.eq.s32.totalorder %s26, 0
      %p112 = por %p110, %p111
      %s114 = sadd.s32 %s113, 1
      %p117 = scmp.eq.s32.totalorder %s20, 3
      %p118 = scmp.ne.s32.totalorder %s113, %s115
      %p119 = scmp.eq.s32.totalorder %s20, 0
      %p120 = por %p118, %p119
      %p121 = scmp.ne.s32.totalorder %s113, %s115
      %p122 = scmp.eq.s32.totalorder %s25, 3
      %p123 = por %p121, %p122
      %p124 = scmp.ne.s32.totalorder %s115, %s116
      %p125 = scmp.eq.s32.totalorder %s25, 0
      %p126 = por %p124, %p125
      %p127 = scmp.ne.s32.totalorder %s115, %s116
      %p128 = scmp.eq.s32.totalorder %s26, 3
      %p129 = por %p127, %p128
      %p131 = scmp.ne.s32.totalorder %s116, %s130
      %p132 = scmp.eq.s32.totalorder %s26, 0
      %p133 = por %p131, %p132
      %s134 = ssub.s32 %s28, %s35
      %s135 = ssub.s32 %s27, %s39
      %s136 = sor.u32 %s134, %s135
      %p137 = scmp.eq.s32.totalorder %s136, 0
      %s139 = sadd.s32 %s138, 1
      %s140 = scalar_select %p137, %s138, %s139
      %p143 = pneg %p137
      %p144 = scmp.eq.s32.totalorder %s20, 3
      %p145 = por %p143, %p144
      %p146 = scmp.ne.s32.totalorder %s138, %s141
      %p147 = scmp.eq.s32.totalorder %s20, 0
      %p148 = por %p146, %p147
      %p149 = scmp.ne.s32.totalorder %s138, %s141
      %p150 = scmp.eq.s32.totalorder %s25, 3
      %p151 = por %p149, %p150
      %p152 = scmp.ne.s32.totalorder %s141, %s142
      %p153 = scmp.eq.s32.totalorder %s25, 0
      %p154 = por %p152, %p153
      %p155 = scmp.ne.s32.totalorder %s141, %s142
      %p156 = scmp.eq.s32.totalorder %s26, 3
      %p157 = por %p155, %p156
      %p159 = scmp.ne.s32.totalorder %s142, %s158
      %p160 = scmp.eq.s32.totalorder %s26, 0
      %p161 = por %p159, %p160
      %s162 = ssub.s32 %s27, %s39
      %p163 = scmp.eq.s32.totalorder %s162, 0
      %s165 = sadd.s32 %s164, 1
      %s166 = scalar_select %p163, %s164, %s165
      %p169 = pneg %p163
      %p170 = scmp.eq.s32.totalorder %s20, 3
      %p171 = por %p169, %p170
      %p172 = scmp.ne.s32.totalorder %s164, %s167
      %p173 = scmp.eq.s32.totalorder %s20, 0
      %p174 = por %p172, %p173
      %p175 = scmp.ne.s32.totalorder %s164, %s167
      %p176 = scmp.eq.s32.totalorder %s25, 3
      %p177 = por %p175, %p176
      %p178 = scmp.ne.s32.totalorder %s167, %s168
      %p179 = scmp.eq.s32.totalorder %s25, 0
      %p180 = por %p178, %p179
      %p181 = scmp.ne.s32.totalorder %s167, %s168
      %p182 = scmp.eq.s32.totalorder %s26, 3
      %p183 = por %p181, %p182
      %p185 = scmp.ne.s32.totalorder %s168, %s184
      %p186 = scmp.eq.s32.totalorder %s26, 0
      %p187 = por %p185, %p186
      %s188 = ssub.s32 %s27, %s39
      %p189 = scmp.eq.s32.totalorder %s188, 0
      %s191 = sadd.s32 %s190, 1
      %s192 = scalar_select %p189, %s190, %s191
      %p195 = pneg %p189
      %p196 = scmp.eq.s32.totalorder %s20, 3
      %p197 = por %p195, %p196
      %p198 = scmp.ne.s32.totalorder %s190, %s193
      %p199 = scmp.eq.s32.totalorder %s20, 0
      %p200 = por %p198, %p199
      %p201 = scmp.ne.s32.totalorder %s190, %s193
      %p202 = scmp.eq.s32.totalorder %s25, 3
      %p203 = por %p201, %p202
      %p204 = scmp.ne.s32.totalorder %s193, %s194
      %p205 = scmp.eq.s32.totalorder %s25, 0
      %p206 = por %p204, %p205
      %p207 = scmp.ne.s32.totalorder %s193, %s194
      %p208 = scmp.eq.s32.totalorder %s26, 3
      %p209 = por %p207, %p208
      %p211 = scmp.ne.s32.totalorder %s194, %s210
      %p212 = scmp.eq.s32.totalorder %s26, 0
      %p213 = por %p211, %p212
      %s214 = ssub.s32 %s27, %s39
      %p215 = scmp.eq.s32.totalorder %s214, 0
      %s217 = sadd.s32 %s216, 1
      %s218 = scalar_select %p215, %s216, %s217
      %p221 = pneg %p215
      %p222 = scmp.eq.s32.totalorder %s20, 3
      %p223 = por %p221, %p222
      %p224 = scmp.ne.s32.totalorder %s216, %s219
      %p225 = scmp.eq.s32.totalorder %s20, 0
      %p226 = por %p224, %p225
      %p227 = scmp.ne.s32.totalorder %s216, %s219
      %p228 = scmp.eq.s32.totalorder %s25, 3
      %p229 = por %p227, %p228
      %p230 = scmp.ne.s32.totalorder %s219, %s220
      %p231 = scmp.eq.s32.totalorder %s25, 0
      %p232 = por %p230, %p231
      %p233 = scmp.ne.s32.totalorder %s219, %s220
      %p234 = scmp.eq.s32.totalorder %s26, 3
      %p235 = por %p233, %p234
      %p237 = scmp.ne.s32.totalorder %s220, %s236
      %p238 = scmp.eq.s32.totalorder %s26, 0
      %p239 = por %p237, %p238
      %p240 = scmp.le.s32.totalorder 1, %s20
      %p241 = scmp.lt.s32.totalorder %s20, 5
      %p242 = pnand %p240, %p241
      %p243 = pneg %p242
      // Predicated region
      $region9: #{tpu_custom_call.1} parent=5 // pred_check
        _
      $region10: #{tpu_custom_call.1} parent=5 // pred_check_branch
        %245 = sbr.rel (%p242) target = $region12
      $region11: #{tpu_custom_call.1} parent=5 // pred_region
        %s246 = ssub.s32 %s20, 1
        // Predicated region
        $region13: #{tpu_custom_call.1} parent=11 // pred_check
          %p247 = pneg %p105
        $region14: #{tpu_custom_call.1} parent=11 // pred_check_branch
          %249 = sbr.rel (%p247) target = $region16
        $region15: #{tpu_custom_call.1} parent=11 // pred_region
          _
        $region16: #{tpu_custom_call.1} parent=11 // pred_fallthru
          _
        // Predicated region
        $region17: #{tpu_custom_call.1} parent=11 // pred_check
          %p250 = pneg %p126
        $region18: #{tpu_custom_call.1} parent=11 // pred_check_branch
          %252 = sbr.rel (%p250) target = $region20
        $region19: #{tpu_custom_call.1} parent=11 // pred_region
          _
        $region20: #{tpu_custom_call.1} parent=11 // pred_fallthru
          _
        // Predicated region
        $region21: #{tpu_custom_call.1} parent=11 // pred_check
          %p253 = pneg %p180
        $region22: #{tpu_custom_call.1} parent=11 // pred_check_branch
          %255 = sbr.rel (%p253) target = $region24
        $region23: #{tpu_custom_call.1} parent=11 // pred_region
          %p256 = scmp.lt.s32.totalorder %s29, 1
          %s257 = scalar_select %p256, %s29, 1
          %s258 = scalar_lea.vmem %s5, %s257
        $region24: #{tpu_custom_call.1} parent=11 // pred_fallthru
          _
        // Predicated region
        $region25: #{tpu_custom_call.1} parent=11 // pred_check
          %p259 = pneg %p206
        $region26: #{tpu_custom_call.1} parent=11 // pred_check_branch
          %261 = sbr.rel (%p259) target = $region28
        $region27: #{tpu_custom_call.1} parent=11 // pred_region
          %s263 = ssub.s32 512, 512
          %264 = vsyncadd [#allocation10], %s263
          %s265 = smul.addr %s29, 128
          %s266 = scalar_lea.hbm %s6, %s265
          %s267 = sshll.u32 [#allocation9], 4
          %s268 = int_to_ptr.vmem [resolvable:$true] %s267
          %273 = dma.hbm_to_vmem [thread:$0]  %s266, 512, %s268, [#allocation10], 256, 128, 8
        $region28: #{tpu_custom_call.1} parent=11 // pred_fallthru
          _
      $region12: #{tpu_custom_call.1} parent=5 // pred_fallthru
        _
      %p274 = scmp.lt.s32.totalorder %s20, 4
      // Predicated region
      $region29: #{tpu_custom_call.1} parent=5 // pred_check
        %p275 = pneg %p274
      $region30: #{tpu_custom_call.1} parent=5 // pred_check_branch
        %277 = sbr.rel (%p275) target = $region32
      $region31: #{tpu_custom_call.1} parent=5 // pred_region
        // Predicated region
        $region33: #{tpu_custom_call.1} parent=31 // pred_check
          %p278 = pneg %p52
        $region34: #{tpu_custom_call.1} parent=31 // pred_check_branch
          %280 = sbr.rel (%p278) target = $region36
        $region35: #{tpu_custom_call.1} parent=31 // pred_region
          %s281 = sand.u32 %s42, 1
          %s282 = scalar_lea.sflag [#allocation5], %s281
          %s283 = sand.u32 %s42, 1
          %s284 = smul.addr %s283, 4
          %s285 = scalar_lea.vmem [#allocation4], %s284
          %s286 = smul.u32 4, %s28
          %s288 = ssub.s32 64, 64
          %289 = vsyncadd %s282, %s288
          %s290 = smul.addr %s286, 16
          %s291 = scalar_lea.hbm %s0, %s290
          %s293 = sshll.u32 %s285, 4
          %s294 = int_to_ptr.vmem [resolvable:$true] %s293
          %296 = dma.hbm_to_vmem [thread:$0]  %s291, 64, %s294, %s282
        $region36: #{tpu_custom_call.1} parent=31 // pred_fallthru
          _
        // Predicated region
        $region37: #{tpu_custom_call.1} parent=31 // pred_check
          %p297 = pneg %p78
        $region38: #{tpu_custom_call.1} parent=31 // pred_check_branch
          %299 = sbr.rel (%p297) target = $region40
        $region39: #{tpu_custom_call.1} parent=31 // pred_region
          %s300 = sand.u32 %s20, 1
          %s301 = scalar_lea.sflag [#allocation7], %s300
          %s302 = sand.u32 %s68, 1
          %s303 = smul.addr %s302, 4
          %s304 = scalar_lea.vmem [#allocation6], %s303
          %s305 = smul.u32 4, %s28
          %s307 = ssub.s32 64, 64
          %308 = vsyncadd %s301, %s307
          %s309 = smul.addr %s305, 16
          %s310 = scalar_lea.hbm %s1, %s309
          %s312 = sshll.u32 %s304, 4
          %s313 = int_to_ptr.vmem [resolvable:$true] %s312
          %315 = dma.hbm_to_vmem [thread:$0]  %s310, 64, %s313, %s301
        $region40: #{tpu_custom_call.1} parent=31 // pred_fallthru
          _
        // Predicated region
        $region41: #{tpu_custom_call.1} parent=31 // pred_check
          %p316 = pneg %p148
        $region42: #{tpu_custom_call.1} parent=31 // pred_check_branch
          %318 = sbr.rel (%p316) target = $region44
        $region43: #{tpu_custom_call.1} parent=31 // pred_region
          %s319 = sand.u32 %s20, 1
          %s320 = scalar_lea.sflag [#allocation7], %s319
          %s321 = sand.u32 %s138, 1
          %s322 = smul.addr %s321, 256
          %s323 = scalar_lea.vmem [#allocation8], %s322
          %s324 = smul.u32 64, %s28
          %s326 = ssub.s32 4096, 4096
          %327 = vsyncadd %s320, %s326
          %s328 = smul.addr %s324, 2
          %s329 = sadd.s32 %s27, %s328
          %s330 = smul.addr %s329, 64
          %s331 = scalar_lea.hbm %s4, %s330
          %s332 = sshll.u32 %s323, 4
          %s333 = int_to_ptr.vmem [resolvable:$true] %s332
          %338 = dma.hbm_to_vmem [thread:$0]  %s331, 4096, %s333, %s320, 128, 64, 4
        $region44: #{tpu_custom_call.1} parent=31 // pred_fallthru
          _
      $region32: #{tpu_custom_call.1} parent=5 // pred_fallthru
        _
      %p339 = scmp.le.s32.totalorder 1, %s20
      %p340 = scmp.lt.s32.totalorder %s20, 5
      %p341 = pnand %p339, %p340
      %p342 = pneg %p341
      // Predicated region
      $region45: #{tpu_custom_call.1} parent=5 // pred_check
        _
      $region46: #{tpu_custom_call.1} parent=5 // pred_check_branch
        %344 = sbr.rel (%p341) target = $region48
      $region47: #{tpu_custom_call.1} parent=5 // pred_region
        %s345 = ssub.s32 %s20, 1
        %s346 = sand.u32 %s45, 1
        %s347 = scalar_lea.sflag [#allocation5], %s346
        %s348 = sand.u32 %s45, 1
        %s349 = smul.addr %s348, 4
        %s350 = scalar_lea.vmem [#allocation4], %s349
        // Predicated region
        $region49: #{tpu_custom_call.1} parent=47 // pred_check
          %p351 = pneg %p58
        $region50: #{tpu_custom_call.1} parent=47 // pred_check_branch
          %353 = sbr.rel (%p351) target = $region52
        $region51: #{tpu_custom_call.1} parent=47 // pred_region
          %354 = dma.done %s347, 64
        $region52: #{tpu_custom_call.1} parent=47 // pred_fallthru
          _
        %s355 = sand.u32 %s25, 1
        %s356 = scalar_lea.sflag [#allocation7], %s355
        %s357 = sand.u32 %s71, 1
        %s358 = smul.addr %s357, 4
        %s359 = scalar_lea.vmem [#allocation6], %s358
        // Predicated region
        $region53: #{tpu_custom_call.1} parent=47 // pred_check
          %p360 = pneg %p84
        $region54: #{tpu_custom_call.1} parent=47 // pred_check_branch
          %362 = sbr.rel (%p360) target = $region56
        $region55: #{tpu_custom_call.1} parent=47 // pred_region
          %363 = dma.done %s356, 64
        $region56: #{tpu_custom_call.1} parent=47 // pred_fallthru
          _
        %s364 = sand.u32 %s25, 1
        %s365 = scalar_lea.sflag [#allocation7], %s364
        %s366 = sand.u32 %s141, 1
        %s367 = smul.addr %s366, 256
        %s368 = scalar_lea.vmem [#allocation8], %s367
        // Predicated region
        $region57: #{tpu_custom_call.1} parent=47 // pred_check
          %p369 = pneg %p154
        $region58: #{tpu_custom_call.1} parent=47 // pred_check_branch
          %371 = sbr.rel (%p369) target = $region60
        $region59: #{tpu_custom_call.1} parent=47 // pred_region
          %372 = dma.done %s365, 4096
        $region60: #{tpu_custom_call.1} parent=47 // pred_fallthru
          _
        // Predicated region
        $region61: #{tpu_custom_call.1} parent=47 // pred_check
          %p373 = pneg %p206
        $region62: #{tpu_custom_call.1} parent=47 // pred_check_branch
          %375 = sbr.rel (%p373) target = $region64
        $region63: #{tpu_custom_call.1} parent=47 // pred_region
          %376 = dma.done [#allocation10], 512
        $region64: #{tpu_custom_call.1} parent=47 // pred_fallthru
          _
        %s377 = sand.u32 %s45, 1
        %s378 = scalar_lea.sflag [#allocation5], %s377
        %s379 = sand.u32 %s45, 1
        %s380 = smul.addr %s379, 4
        %s381 = scalar_lea.vmem [#allocation4], %s380
        %p382 = pneg %p58
        %p383 = pneg %p55
        %s384 = sand.u32 %s25, 1
        %s385 = scalar_lea.sflag [#allocation7], %s384
        %s386 = sand.u32 %s71, 1
        %s387 = smul.addr %s386, 4
        %s388 = scalar_lea.vmem [#allocation6], %s387
        %p389 = pneg %p84
        %p390 = pneg %p81
        %p391 = pneg %p105
        %p392 = pneg %p102
        %p393 = pneg %p126
        %p394 = pneg %p123
        %s395 = sand.u32 %s25, 1
        %s396 = scalar_lea.sflag [#allocation7], %s395
        %s397 = sand.u32 %s141, 1
        %s398 = smul.addr %s397, 256
        %s399 = scalar_lea.vmem [#allocation8], %s398
        %p400 = pneg %p154
        %p401 = pneg %p151
        %p402 = scmp.lt.s32.totalorder %s29, 1
        %s403 = scalar_select %p402, %s29, 1
        %s404 = scalar_lea.vmem %s5, %s403
        %p405 = pneg %p180
        %p406 = pneg %p177
        %p407 = pneg %p206
        %p408 = pneg %p203
        %p409 = pneg %p232
        %p410 = pneg %p229
        %p411 = scmp.lt.s32.totalorder %s29, 1
        %s412 = scalar_select %p411, %s29, 1
        %s413 = smul.addr %s412, 2
        %s414 = smul.addr %s413, 8
        %s415 = scalar_lea.vmem %s7, %s414
        %s416 = smul.u32 4, %s30
        %s417 = smul.u32 4, %s30
        %s418 = smul.u32 64, %s30
        %p419 = scmp.lt.s32.totalorder %s29, 1
        %s420 = scalar_select %p419, %s29, 1
        %s421 = scalar_lea.vmem %s5, %s420
        %p422 = scmp.lt.s32.totalorder %s29, 1
        %s423 = scalar_select %p422, %s29, 1
        %s424 = smul.addr %s423, 2
        %s425 = smul.addr %s424, 8
        %s426 = scalar_lea.vmem %s7, %s425
        %p428 = scmp.eq.s32.totalorder %s30, 0
        // Predicated region
        $region65: #{tpu_custom_call.1} parent=47 // pred_check
          %p429 = pneg %p428
        $region66: #{tpu_custom_call.1} parent=47 // pred_check_branch
          %431 = sbr.rel (%p429) target = $region68
        $region67: #{tpu_custom_call.1} parent=47 // pred_region
          %432 = vst [vmem:[#allocation2] sm:$0x3] 0.0
          %433 = vst [vmem:[#allocation3] sm:$0x3] 0.0
        $region68: #{tpu_custom_call.1} parent=47 // pred_fallthru
          _
        %v434 = vld [vmem:[#allocation2] sm:$0x3]
        %v435 = vld [vmem:[%s350] sm:$0xf]
        %v436 = vld [vmem:[%s368] sm:$0xf]
        %v437 = vld [vmem:[%s368 + $0x4] sm:$0xf]
        %v438 = vld [vmem:[%s368 + $0x8] sm:$0xf]
        %v439 = vld [vmem:[%s368 + $0xc] sm:$0xf]
        %v440 = vld [vmem:[%s368 + $0x10] sm:$0xf]
        %v441 = vld [vmem:[%s368 + $0x14] sm:$0xf]
        %v442 = vld [vmem:[%s368 + $0x18] sm:$0xf]
        %v443 = vld [vmem:[%s368 + $0x1c] sm:$0xf]
        %v444 = vld [vmem:[%s368 + $0x20] sm:$0xf]
        %v445 = vld [vmem:[%s368 + $0x24] sm:$0xf]
        %v446 = vld [vmem:[%s368 + $0x28] sm:$0xf]
        %v447 = vld [vmem:[%s368 + $0x2c] sm:$0xf]
        %v448 = vld [vmem:[%s368 + $0x30] sm:$0xf]
        %v449 = vld [vmem:[%s368 + $0x34] sm:$0xf]
        %v450 = vld [vmem:[%s368 + $0x38] sm:$0xf]
        %v451 = vld [vmem:[%s368 + $0x3c] sm:$0xf]
        %v452 = vld [vmem:[%s368 + $0x40] sm:$0xf]
        %v453 = vld [vmem:[%s368 + $0x44] sm:$0xf]
        %v454 = vld [vmem:[%s368 + $0x48] sm:$0xf]
        %v455 = vld [vmem:[%s368 + $0x4c] sm:$0xf]
        %v456 = vld [vmem:[%s368 + $0x50] sm:$0xf]
        %v457 = vld [vmem:[%s368 + $0x54] sm:$0xf]
        %v458 = vld [vmem:[%s368 + $0x58] sm:$0xf]
        %v459 = vld [vmem:[%s368 + $0x5c] sm:$0xf]
        %v460 = vld [vmem:[%s368 + $0x60] sm:$0xf]
        %v461 = vld [vmem:[%s368 + $0x64] sm:$0xf]
        %v462 = vld [vmem:[%s368 + $0x68] sm:$0xf]
        %v463 = vld [vmem:[%s368 + $0x6c] sm:$0xf]
        %v464 = vld [vmem:[%s368 + $0x70] sm:$0xf]
        %v465 = vld [vmem:[%s368 + $0x74] sm:$0xf]
        %v466 = vld [vmem:[%s368 + $0x78] sm:$0xf]
        %v467 = vld [vmem:[%s368 + $0x7c] sm:$0xf]
        %v468 = vld [vmem:[%s368 + $0x80] sm:$0xf]
        %v469 = vld [vmem:[%s368 + $0x84] sm:$0xf]
        %v470 = vld [vmem:[%s368 + $0x88] sm:$0xf]
        %v471 = vld [vmem:[%s368 + $0x8c] sm:$0xf]
        %v472 = vld [vmem:[%s368 + $0x90] sm:$0xf]
        %v473 = vld [vmem:[%s368 + $0x94] sm:$0xf]
        %v474 = vld [vmem:[%s368 + $0x98] sm:$0xf]
        %v475 = vld [vmem:[%s368 + $0x9c] sm:$0xf]
        %v476 = vld [vmem:[%s368 + $0xa0] sm:$0xf]
        %v477 = vld [vmem:[%s368 + $0xa4] sm:$0xf]
        %v478 = vld [vmem:[%s368 + $0xa8] sm:$0xf]
        %v479 = vld [vmem:[%s368 + $0xac] sm:$0xf]
        %v480 = vld [vmem:[%s368 + $0xb0] sm:$0xf]
        %v481 = vld [vmem:[%s368 + $0xb4] sm:$0xf]
        %v482 = vld [vmem:[%s368 + $0xb8] sm:$0xf]
        %v483 = vld [vmem:[%s368 + $0xbc] sm:$0xf]
        %v484 = vld [vmem:[%s368 + $0xc0] sm:$0xf]
        %v485 = vld [vmem:[%s368 + $0xc4] sm:$0xf]
        %v486 = vld [vmem:[%s368 + $0xc8] sm:$0xf]
        %v487 = vld [vmem:[%s368 + $0xcc] sm:$0xf]
        %v488 = vld [vmem:[%s368 + $0xd0] sm:$0xf]
        %v489 = vld [vmem:[%s368 + $0xd4] sm:$0xf]
        %v490 = vld [vmem:[%s368 + $0xd8] sm:$0xf]
        %v491 = vld [vmem:[%s368 + $0xdc] sm:$0xf]
        %v492 = vld [vmem:[%s368 + $0xe0] sm:$0xf]
        %v493 = vld [vmem:[%s368 + $0xe4] sm:$0xf]
        %v494 = vld [vmem:[%s368 + $0xe8] sm:$0xf]
        %v495 = vld [vmem:[%s368 + $0xec] sm:$0xf]
        %v496 = vld [vmem:[%s368 + $0xf0] sm:$0xf]
        %v497 = vld [vmem:[%s368 + $0xf4] sm:$0xf]
        %v498 = vld [vmem:[%s368 + $0xf8] sm:$0xf]
        %v499 = vld [vmem:[%s368 + $0xfc] sm:$0xf]
        %v502 = vunpack.c.l.s4 1966171168
        %v503 = vunpack.c.0.s8 %v502
        %v504 = vlaneseq
        %v505 = vshrl.u32 %v504, 7
        %v506 = vsub.s32 %v503, %v505
        %v507 = vrot.slane %v435, %v506
        %v508 = vcombine.high %v507, %v507
        %v510 = vunpack.c.l.s4 1966171168
        %v511 = vunpack.c.0.s8 %v510
        %v512 = vlaneseq
        %v513 = vshrl.u32 %v512, 7
        %v514 = vsub.s32 %v511, %v513
        %v515 = vrot.slane %v507, %v514
        %v517 = vunpack.c.l.s4 1966171168
        %v518 = vunpack.c.0.s8 %v517
        %v519 = vlaneseq
        %v520 = vshrl.u32 %v519, 7
        %v521 = vsub.s32 %v518, %v520
        %v522 = vrot.slane %v508, %v521
        %v523 = vcombine.high %v515, %v515
        %v524 = vcombine.high %v522, %v522
        %v593 = vunpack.c.l.b16 %v436
        %v594 = vunpack.c.l.b16 %v437
        %v595 = vunpack.c.l.b16 %v438
        %v596 = vunpack.c.l.b16 %v439
        %v597 = vunpack.c.l.b16 %v440
        %v598 = vunpack.c.l.b16 %v441
        %v599 = vunpack.c.l.b16 %v442
        %v600 = vunpack.c.l.b16 %v443
        %v601 = vunpack.c.l.b16 %v444
        %v602 = vunpack.c.l.b16 %v445
        %v603 = vunpack.c.l.b16 %v446
        %v604 = vunpack.c.l.b16 %v447
        %v605 = vunpack.c.l.b16 %v448
        %v606 = vunpack.c.l.b16 %v449
        %v607 = vunpack.c.l.b16 %v450
        %v608 = vunpack.c.l.b16 %v451
        %v609 = vunpack.c.l.b16 %v452
        %v610 = vunpack.c.l.b16 %v453
        %v611 = vunpack.c.l.b16 %v454
        %v612 = vunpack.c.l.b16 %v455
        %v613 = vunpack.c.l.b16 %v456
        %v614 = vunpack.c.l.b16 %v457
        %v615 = vunpack.c.l.b16 %v458
        %v616 = vunpack.c.l.b16 %v459
        %v617 = vunpack.c.l.b16 %v460
        %v618 = vunpack.c.l.b16 %v461
        %v619 = vunpack.c.l.b16 %v462
        %v620 = vunpack.c.l.b16 %v463
        %v621 = vunpack.c.l.b16 %v464
        %v622 = vunpack.c.l.b16 %v465
        %v623 = vunpack.c.l.b16 %v466
        %v624 = vunpack.c.l.b16 %v467
        %v625 = vunpack.c.l.b16 %v468
        %v626 = vunpack.c.l.b16 %v469
        %v627 = vunpack.c.l.b16 %v470
        %v628 = vunpack.c.l.b16 %v471
        %v629 = vunpack.c.l.b16 %v472
        %v630 = vunpack.c.l.b16 %v473
        %v631 = vunpack.c.l.b16 %v474
        %v632 = vunpack.c.l.b16 %v475
        %v633 = vunpack.c.l.b16 %v476
        %v634 = vunpack.c.l.b16 %v477
        %v635 = vunpack.c.l.b16 %v478
        %v636 = vunpack.c.l.b16 %v479
        %v637 = vunpack.c.l.b16 %v480
        %v638 = vunpack.c.l.b16 %v481
        %v639 = vunpack.c.l.b16 %v482
        %v640 = vunpack.c.l.b16 %v483
        %v641 = vunpack.c.l.b16 %v484
        %v642 = vunpack.c.l.b16 %v485
        %v643 = vunpack.c.l.b16 %v486
        %v644 = vunpack.c.l.b16 %v487
        %v645 = vunpack.c.l.b16 %v488
        %v646 = vunpack.c.l.b16 %v489
        %v647 = vunpack.c.l.b16 %v490
        %v648 = vunpack.c.l.b16 %v491
        %v649 = vunpack.c.l.b16 %v492
        %v650 = vunpack.c.l.b16 %v493
        %v651 = vunpack.c.l.b16 %v494
        %v652 = vunpack.c.l.b16 %v495
        %v653 = vunpack.c.l.b16 %v496
        %v654 = vunpack.c.l.b16 %v497
        %v655 = vunpack.c.l.b16 %v498
        %v656 = vunpack.c.l.b16 %v499
        %v657 = vpack.c.b16 %v594, %v593
        %v658 = vpack.c.b16 %v596, %v595
        %v659 = vpack.c.b16 %v598, %v597
        %v660 = vpack.c.b16 %v600, %v599
        %v661 = vpack.c.b16 %v602, %v601
        %v662 = vpack.c.b16 %v604, %v603
        %v663 = vpack.c.b16 %v606, %v605
        %v664 = vpack.c.b16 %v608, %v607
        %v665 = vpack.c.b16 %v610, %v609
        %v666 = vpack.c.b16 %v612, %v611
        %v667 = vpack.c.b16 %v614, %v613
        %v668 = vpack.c.b16 %v616, %v615
        %v669 = vpack.c.b16 %v618, %v617
        %v670 = vpack.c.b16 %v620, %v619
        %v671 = vpack.c.b16 %v622, %v621
        %v672 = vpack.c.b16 %v624, %v623
        %v673 = vpack.c.b16 %v626, %v625
        %v674 = vpack.c.b16 %v628, %v627
        %v675 = vpack.c.b16 %v630, %v629
        %v676 = vpack.c.b16 %v632, %v631
        %v677 = vpack.c.b16 %v634, %v633
        %v678 = vpack.c.b16 %v636, %v635
        %v679 = vpack.c.b16 %v638, %v637
        %v680 = vpack.c.b16 %v640, %v639
        %v681 = vpack.c.b16 %v642, %v641
        %v682 = vpack.c.b16 %v644, %v643
        %v683 = vpack.c.b16 %v646, %v645
        %v684 = vpack.c.b16 %v648, %v647
        %v685 = vpack.c.b16 %v650, %v649
        %v686 = vpack.c.b16 %v652, %v651
        %v687 = vpack.c.b16 %v654, %v653
        %v688 = vpack.c.b16 %v656, %v655
        %721 = vmatprep.subr.bf16.mxu0 0
        %722 = vmatpush1.bf16.msra.mxu0 %v657
        %723 = vmatprep.subr.bf16.mxu0 0
        %724 = vmatpush1.bf16.msra.mxu0 %v658
        %725 = vmatprep.subr.bf16.mxu0 0
        %726 = vmatpush1.bf16.msra.mxu0 %v659
        %727 = vmatprep.subr.bf16.mxu0 0
        %728 = vmatpush1.bf16.msra.mxu0 %v660
        %729 = vmatprep.subr.bf16.mxu0 0
        %730 = vmatpush1.bf16.msra.mxu0 %v661
        %731 = vmatprep.subr.bf16.mxu0 0
        %732 = vmatpush1.bf16.msra.mxu0 %v662
        %733 = vmatprep.subr.bf16.mxu0 0
        %734 = vmatpush1.bf16.msra.mxu0 %v663
        %735 = vmatprep.subr.bf16.mxu0 0
        %736 = vmatpush1.bf16.msra.mxu0 %v664
        %737 = vmatprep.subr.bf16.mxu0 0
        %738 = vmatpush1.bf16.msra.mxu0 %v665
        %739 = vmatprep.subr.bf16.mxu0 0
        %740 = vmatpush1.bf16.msra.mxu0 %v666
        %741 = vmatprep.subr.bf16.mxu0 0
        %742 = vmatpush1.bf16.msra.mxu0 %v667
        %743 = vmatprep.subr.bf16.mxu0 0
        %744 = vmatpush1.bf16.msra.mxu0 %v668
        %745 = vmatprep.subr.bf16.mxu0 0
        %746 = vmatpush1.bf16.msra.mxu0 %v669
        %747 = vmatprep.subr.bf16.mxu0 0
        %748 = vmatpush1.bf16.msra.mxu0 %v670
        %749 = vmatprep.subr.bf16.mxu0 0
        %750 = vmatpush1.bf16.msra.mxu0 %v671
        %751 = vmatprep.subr.bf16.mxu0 0
        %752 = vmatpush1.bf16.msra.mxu0 %v672
        %753 = vmatprep.mubr.bf16.mxu0 %v522
        %754 = vmatmul.mubr.bf16.gmra.mrb[0].mxu0 %v515
        %v755 = vpop.f32.mrb[0].mxu0
        %v756 = vadd.f32 0.0, %v755
        %v757 = vpop.f32.mrb[0].mxu0
        %v758 = vpop.f32.mrb[0].mxu0
        %v759 = vpop.f32.mrb[0].mxu0
        %760 = vdwg.mxu0
        %761 = vmatprep.subr.bf16.mxu0 0
        %762 = vmatpush1.bf16.msra.mxu0 %v673
        %763 = vmatprep.subr.bf16.mxu0 0
        %764 = vmatpush1.bf16.msra.mxu0 %v674
        %765 = vmatprep.subr.bf16.mxu0 0
        %766 = vmatpush1.bf16.msra.mxu0 %v675
        %767 = vmatprep.subr.bf16.mxu0 0
        %768 = vmatpush1.bf16.msra.mxu0 %v676
        %769 = vmatprep.subr.bf16.mxu0 0
        %770 = vmatpush1.bf16.msra.mxu0 %v677
        %771 = vmatprep.subr.bf16.mxu0 0
        %772 = vmatpush1.bf16.msra.mxu0 %v678
        %773 = vmatprep.subr.bf16.mxu0 0
        %774 = vmatpush1.bf16.msra.mxu0 %v679
        %775 = vmatprep.subr.bf16.mxu0 0
        %776 = vmatpush1.bf16.msra.mxu0 %v680
        %777 = vmatprep.subr.bf16.mxu0 0
        %778 = vmatpush1.bf16.msra.mxu0 %v681
        %779 = vmatprep.subr.bf16.mxu0 0
        %780 = vmatpush1.bf16.msra.mxu0 %v682
        %781 = vmatprep.subr.bf16.mxu0 0
        %782 = vmatpush1.bf16.msra.mxu0 %v683
        %783 = vmatprep.subr.bf16.mxu0 0
        %784 = vmatpush1.bf16.msra.mxu0 %v684
        %785 = vmatprep.subr.bf16.mxu0 0
        %786 = vmatpush1.bf16.msra.mxu0 %v685
        %787 = vmatprep.subr.bf16.mxu0 0
        %788 = vmatpush1.bf16.msra.mxu0 %v686
        %789 = vmatprep.subr.bf16.mxu0 0
        %790 = vmatpush1.bf16.msra.mxu0 %v687
        %791 = vmatprep.subr.bf16.mxu0 0
        %792 = vmatpush1.bf16.msra.mxu0 %v688
        %793 = vmatprep.mubr.bf16.mxu0 %v524
        %794 = vmatmul.mubr.bf16.gmra.mrb[0].mxu0 %v523
        %v795 = vpop.f32.mrb[0].mxu0
        %v796 = vadd.f32 %v756, %v795
        %v797 = vpop.f32.mrb[0].mxu0
        %v798 = vpop.f32.mrb[0].mxu0
        %v799 = vpop.f32.mrb[0].mxu0
        %800 = vdwg.mxu0
        %v801 = vadd.f32 %v434, %v796
        %802 = vst [vmem:[#allocation2] sm:$0x3] %v801
        %v803 = vld [vmem:[#allocation3] sm:$0x3]
        %v804 = vld [vmem:[%s359] sm:$0xf]
        %v805 = vld [vmem:[%s368] sm:$0xf]
        %v806 = vld [vmem:[%s368 + $0x4] sm:$0xf]
        %v807 = vld [vmem:[%s368 + $0x8] sm:$0xf]
        %v808 = vld [vmem:[%s368 + $0xc] sm:$0xf]
        %v809 = vld [vmem:[%s368 + $0x10] sm:$0xf]
        %v810 = vld [vmem:[%s368 + $0x14] sm:$0xf]
        %v811 = vld [vmem:[%s368 + $0x18] sm:$0xf]
        %v812 = vld [vmem:[%s368 + $0x1c] sm:$0xf]
        %v813 = vld [vmem:[%s368 + $0x20] sm:$0xf]
        %v814 = vld [vmem:[%s368 + $0x24] sm:$0xf]
        %v815 = vld [vmem:[%s368 + $0x28] sm:$0xf]
        %v816 = vld [vmem:[%s368 + $0x2c] sm:$0xf]
        %v817 = vld [vmem:[%s368 + $0x30] sm:$0xf]
        %v818 = vld [vmem:[%s368 + $0x34] sm:$0xf]
        %v819 = vld [vmem:[%s368 + $0x38] sm:$0xf]
        %v820 = vld [vmem:[%s368 + $0x3c] sm:$0xf]
        %v821 = vld [vmem:[%s368 + $0x40] sm:$0xf]
        %v822 = vld [vmem:[%s368 + $0x44] sm:$0xf]
        %v823 = vld [vmem:[%s368 + $0x48] sm:$0xf]
        %v824 = vld [vmem:[%s368 + $0x4c] sm:$0xf]
        %v825 = vld [vmem:[%s368 + $0x50] sm:$0xf]
        %v826 = vld [vmem:[%s368 + $0x54] sm:$0xf]
        %v827 = vld [vmem:[%s368 + $0x58] sm:$0xf]
        %v828 = vld [vmem:[%s368 + $0x5c] sm:$0xf]
        %v829 = vld [vmem:[%s368 + $0x60] sm:$0xf]
        %v830 = vld [vmem:[%s368 + $0x64] sm:$0xf]
        %v831 = vld [vmem:[%s368 + $0x68] sm:$0xf]
        %v832 = vld [vmem:[%s368 + $0x6c] sm:$0xf]
        %v833 = vld [vmem:[%s368 + $0x70] sm:$0xf]
        %v834 = vld [vmem:[%s368 + $0x74] sm:$0xf]
        %v835 = vld [vmem:[%s368 + $0x78] sm:$0xf]
        %v836 = vld [vmem:[%s368 + $0x7c] sm:$0xf]
        %v837 = vld [vmem:[%s368 + $0x80] sm:$0xf]
        %v838 = vld [vmem:[%s368 + $0x84] sm:$0xf]
        %v839 = vld [vmem:[%s368 + $0x88] sm:$0xf]
        %v840 = vld [vmem:[%s368 + $0x8c] sm:$0xf]
        %v841 = vld [vmem:[%s368 + $0x90] sm:$0xf]
        %v842 = vld [vmem:[%s368 + $0x94] sm:$0xf]
        %v843 = vld [vmem:[%s368 + $0x98] sm:$0xf]
        %v844 = vld [vmem:[%s368 + $0x9c] sm:$0xf]
        %v845 = vld [vmem:[%s368 + $0xa0] sm:$0xf]
        %v846 = vld [vmem:[%s368 + $0xa4] sm:$0xf]
        %v847 = vld [vmem:[%s368 + $0xa8] sm:$0xf]
        %v848 = vld [vmem:[%s368 + $0xac] sm:$0xf]
        %v849 = vld [vmem:[%s368 + $0xb0] sm:$0xf]
        %v850 = vld [vmem:[%s368 + $0xb4] sm:$0xf]
        %v851 = vld [vmem:[%s368 + $0xb8] sm:$0xf]
        %v852 = vld [vmem:[%s368 + $0xbc] sm:$0xf]
        %v853 = vld [vmem:[%s368 + $0xc0] sm:$0xf]
        %v854 = vld [vmem:[%s368 + $0xc4] sm:$0xf]
        %v855 = vld [vmem:[%s368 + $0xc8] sm:$0xf]
        %v856 = vld [vmem:[%s368 + $0xcc] sm:$0xf]
        %v857 = vld [vmem:[%s368 + $0xd0] sm:$0xf]
        %v858 = vld [vmem:[%s368 + $0xd4] sm:$0xf]
        %v859 = vld [vmem:[%s368 + $0xd8] sm:$0xf]
        %v860 = vld [vmem:[%s368 + $0xdc] sm:$0xf]
        %v861 = vld [vmem:[%s368 + $0xe0] sm:$0xf]
        %v862 = vld [vmem:[%s368 + $0xe4] sm:$0xf]
        %v863 = vld [vmem:[%s368 + $0xe8] sm:$0xf]
        %v864 = vld [vmem:[%s368 + $0xec] sm:$0xf]
        %v865 = vld [vmem:[%s368 + $0xf0] sm:$0xf]
        %v866 = vld [vmem:[%s368 + $0xf4] sm:$0xf]
        %v867 = vld [vmem:[%s368 + $0xf8] sm:$0xf]
        %v868 = vld [vmem:[%s368 + $0xfc] sm:$0xf]
        %v871 = vunpack.c.l.s4 1966171168
        %v872 = vunpack.c.0.s8 %v871
        %v873 = vlaneseq
        %v874 = vshrl.u32 %v873, 7
        %v875 = vsub.s32 %v872, %v874
        %v876 = vrot.slane %v804, %v875
        %v877 = vcombine.high %v876, %v876
        %v879 = vunpack.c.l.s4 1966171168
        %v880 = vunpack.c.0.s8 %v879
        %v881 = vlaneseq
        %v882 = vshrl.u32 %v881, 7
        %v883 = vsub.s32 %v880, %v882
        %v884 = vrot.slane %v876, %v883
        %v886 = vunpack.c.l.s4 1966171168
        %v887 = vunpack.c.0.s8 %v886
        %v888 = vlaneseq
        %v889 = vshrl.u32 %v888, 7
        %v890 = vsub.s32 %v887, %v889
        %v891 = vrot.slane %v877, %v890
        %v892 = vcombine.high %v884, %v884
        %v893 = vcombine.high %v891, %v891
        %v962 = vunpack.c.l.b16 %v805
        %v963 = vunpack.c.l.b16 %v806
        %v964 = vunpack.c.l.b16 %v807
        %v965 = vunpack.c.l.b16 %v808
        %v966 = vunpack.c.l.b16 %v809
        %v967 = vunpack.c.l.b16 %v810
        %v968 = vunpack.c.l.b16 %v811
        %v969 = vunpack.c.l.b16 %v812
        %v970 = vunpack.c.l.b16 %v813
        %v971 = vunpack.c.l.b16 %v814
        %v972 = vunpack.c.l.b16 %v815
        %v973 = vunpack.c.l.b16 %v816
        %v974 = vunpack.c.l.b16 %v817
        %v975 = vunpack.c.l.b16 %v818
        %v976 = vunpack.c.l.b16 %v819
        %v977 = vunpack.c.l.b16 %v820
        %v978 = vunpack.c.l.b16 %v821
        %v979 = vunpack.c.l.b16 %v822
        %v980 = vunpack.c.l.b16 %v823
        %v981 = vunpack.c.l.b16 %v824
        %v982 = vunpack.c.l.b16 %v825
        %v983 = vunpack.c.l.b16 %v826
        %v984 = vunpack.c.l.b16 %v827
        %v985 = vunpack.c.l.b16 %v828
        %v986 = vunpack.c.l.b16 %v829
        %v987 = vunpack.c.l.b16 %v830
        %v988 = vunpack.c.l.b16 %v831
        %v989 = vunpack.c.l.b16 %v832
        %v990 = vunpack.c.l.b16 %v833
        %v991 = vunpack.c.l.b16 %v834
        %v992 = vunpack.c.l.b16 %v835
        %v993 = vunpack.c.l.b16 %v836
        %v994 = vunpack.c.l.b16 %v837
        %v995 = vunpack.c.l.b16 %v838
        %v996 = vunpack.c.l.b16 %v839
        %v997 = vunpack.c.l.b16 %v840
        %v998 = vunpack.c.l.b16 %v841
        %v999 = vunpack.c.l.b16 %v842
        %v1000 = vunpack.c.l.b16 %v843
        %v1001 = vunpack.c.l.b16 %v844
        %v1002 = vunpack.c.l.b16 %v845
        %v1003 = vunpack.c.l.b16 %v846
        %v1004 = vunpack.c.l.b16 %v847
        %v1005 = vunpack.c.l.b16 %v848
        %v1006 = vunpack.c.l.b16 %v849
        %v1007 = vunpack.c.l.b16 %v850
        %v1008 = vunpack.c.l.b16 %v851
        %v1009 = vunpack.c.l.b16 %v852
        %v1010 = vunpack.c.l.b16 %v853
        %v1011 = vunpack.c.l.b16 %v854
        %v1012 = vunpack.c.l.b16 %v855
        %v1013 = vunpack.c.l.b16 %v856
        %v1014 = vunpack.c.l.b16 %v857
        %v1015 = vunpack.c.l.b16 %v858
        %v1016 = vunpack.c.l.b16 %v859
        %v1017 = vunpack.c.l.b16 %v860
        %v1018 = vunpack.c.l.b16 %v861
        %v1019 = vunpack.c.l.b16 %v862
        %v1020 = vunpack.c.l.b16 %v863
        %v1021 = vunpack.c.l.b16 %v864
        %v1022 = vunpack.c.l.b16 %v865
        %v1023 = vunpack.c.l.b16 %v866
        %v1024 = vunpack.c.l.b16 %v867
        %v1025 = vunpack.c.l.b16 %v868
        %v1026 = vpack.c.b16 %v963, %v962
        %v1027 = vpack.c.b16 %v965, %v964
        %v1028 = vpack.c.b16 %v967, %v966
        %v1029 = vpack.c.b16 %v969, %v968
        %v1030 = vpack.c.b16 %v971, %v970
        %v1031 = vpack.c.b16 %v973, %v972
        %v1032 = vpack.c.b16 %v975, %v974
        %v1033 = vpack.c.b16 %v977, %v976
        %v1034 = vpack.c.b16 %v979, %v978
        %v1035 = vpack.c.b16 %v981, %v980
        %v1036 = vpack.c.b16 %v983, %v982
        %v1037 = vpack.c.b16 %v985, %v984
        %v1038 = vpack.c.b16 %v987, %v986
        %v1039 = vpack.c.b16 %v989, %v988
        %v1040 = vpack.c.b16 %v991, %v990
        %v1041 = vpack.c.b16 %v993, %v992
        %v1042 = vpack.c.b16 %v995, %v994
        %v1043 = vpack.c.b16 %v997, %v996
        %v1044 = vpack.c.b16 %v999, %v998
        %v1045 = vpack.c.b16 %v1001, %v1000
        %v1046 = vpack.c.b16 %v1003, %v1002
        %v1047 = vpack.c.b16 %v1005, %v1004
        %v1048 = vpack.c.b16 %v1007, %v1006
        %v1049 = vpack.c.b16 %v1009, %v1008
        %v1050 = vpack.c.b16 %v1011, %v1010
        %v1051 = vpack.c.b16 %v1013, %v1012
        %v1052 = vpack.c.b16 %v1015, %v1014
        %v1053 = vpack.c.b16 %v1017, %v1016
        %v1054 = vpack.c.b16 %v1019, %v1018
        %v1055 = vpack.c.b16 %v1021, %v1020
        %v1056 = vpack.c.b16 %v1023, %v1022
        %v1057 = vpack.c.b16 %v1025, %v1024
        %1090 = vmatprep.subr.bf16.mxu0 0
        %1091 = vmatpush1.bf16.msra.mxu0 %v1026
        %1092 = vmatprep.subr.bf16.mxu0 0
        %1093 = vmatpush1.bf16.msra.mxu0 %v1027
        %1094 = vmatprep.subr.bf16.mxu0 0
        %1095 = vmatpush1.bf16.msra.mxu0 %v1028
        %1096 = vmatprep.subr.bf16.mxu0 0
        %1097 = vmatpush1.bf16.msra.mxu0 %v1029
        %1098 = vmatprep.subr.bf16.mxu0 0
        %1099 = vmatpush1.bf16.msra.mxu0 %v1030
        %1100 = vmatprep.subr.bf16.mxu0 0
        %1101 = vmatpush1.bf16.msra.mxu0 %v1031
        %1102 = vmatprep.subr.bf16.mxu0 0
        %1103 = vmatpush1.bf16.msra.mxu0 %v1032
        %1104 = vmatprep.subr.bf16.mxu0 0
        %1105 = vmatpush1.bf16.msra.mxu0 %v1033
        %1106 = vmatprep.subr.bf16.mxu0 0
        %1107 = vmatpush1.bf16.msra.mxu0 %v1034
        %1108 = vmatprep.subr.bf16.mxu0 0
        %1109 = vmatpush1.bf16.msra.mxu0 %v1035
        %1110 = vmatprep.subr.bf16.mxu0 0
        %1111 = vmatpush1.bf16.msra.mxu0 %v1036
        %1112 = vmatprep.subr.bf16.mxu0 0
        %1113 = vmatpush1.bf16.msra.mxu0 %v1037
        %1114 = vmatprep.subr.bf16.mxu0 0
        %1115 = vmatpush1.bf16.msra.mxu0 %v1038
        %1116 = vmatprep.subr.bf16.mxu0 0
        %1117 = vmatpush1.bf16.msra.mxu0 %v1039
        %1118 = vmatprep.subr.bf16.mxu0 0
        %1119 = vmatpush1.bf16.msra.mxu0 %v1040
        %1120 = vmatprep.subr.bf16.mxu0 0
        %1121 = vmatpush1.bf16.msra.mxu0 %v1041
        %1122 = vmatprep.mubr.bf16.mxu0 %v891
        %1123 = vmatmul.mubr.bf16.gmra.mrb[0].mxu0 %v884
        %v1124 = vpop.f32.mrb[0].mxu0
        %v1125 = vadd.f32 0.0, %v1124
        %v1126 = vpop.f32.mrb[0].mxu0
        %v1127 = vpop.f32.mrb[0].mxu0
        %v1128 = vpop.f32.mrb[0].mxu0
        %1129 = vdwg.mxu0
        %1130 = vmatprep.subr.bf16.mxu0 0
        %1131 = vmatpush1.bf16.msra.mxu0 %v1042
        %1132 = vmatprep.subr.bf16.mxu0 0
        %1133 = vmatpush1.bf16.msra.mxu0 %v1043
        %1134 = vmatprep.subr.bf16.mxu0 0
        %1135 = vmatpush1.bf16.msra.mxu0 %v1044
        %1136 = vmatprep.subr.bf16.mxu0 0
        %1137 = vmatpush1.bf16.msra.mxu0 %v1045
        %1138 = vmatprep.subr.bf16.mxu0 0
        %1139 = vmatpush1.bf16.msra.mxu0 %v1046
        %1140 = vmatprep.subr.bf16.mxu0 0
        %1141 = vmatpush1.bf16.msra.mxu0 %v1047
        %1142 = vmatprep.subr.bf16.mxu0 0
        %1143 = vmatpush1.bf16.msra.mxu0 %v1048
        %1144 = vmatprep.subr.bf16.mxu0 0
        %1145 = vmatpush1.bf16.msra.mxu0 %v1049
        %1146 = vmatprep.subr.bf16.mxu0 0
        %1147 = vmatpush1.bf16.msra.mxu0 %v1050
        %1148 = vmatprep.subr.bf16.mxu0 0
        %1149 = vmatpush1.bf16.msra.mxu0 %v1051
        %1150 = vmatprep.subr.bf16.mxu0 0
        %1151 = vmatpush1.bf16.msra.mxu0 %v1052
        %1152 = vmatprep.subr.bf16.mxu0 0
        %1153 = vmatpush1.bf16.msra.mxu0 %v1053
        %1154 = vmatprep.subr.bf16.mxu0 0
        %1155 = vmatpush1.bf16.msra.mxu0 %v1054
        %1156 = vmatprep.subr.bf16.mxu0 0
        %1157 = vmatpush1.bf16.msra.mxu0 %v1055
        %1158 = vmatprep.subr.bf16.mxu0 0
        %1159 = vmatpush1.bf16.msra.mxu0 %v1056
        %1160 = vmatprep.subr.bf16.mxu0 0
        %1161 = vmatpush1.bf16.msra.mxu0 %v1057
        %1162 = vmatprep.mubr.bf16.mxu0 %v893
        %1163 = vmatmul.mubr.bf16.gmra.mrb[0].mxu0 %v892
        %v1164 = vpop.f32.mrb[0].mxu0
        %v1165 = vadd.f32 %v1125, %v1164
        %v1166 = vpop.f32.mrb[0].mxu0
        %v1167 = vpop.f32.mrb[0].mxu0
        %v1168 = vpop.f32.mrb[0].mxu0
        %1169 = vdwg.mxu0
        %v1170 = vadd.f32 %v803, %v1165
        %1171 = vst [vmem:[#allocation3] sm:$0x3] %v1170
        %p1172 = scmp.eq.s32.totalorder %s30, 1
        // Predicated region
        $region69: #{tpu_custom_call.1} parent=47 // pred_check
          %p1173 = pneg %p1172
        $region70: #{tpu_custom_call.1} parent=47 // pred_check_branch
          %1175 = sbr.rel (%p1173) target = $region72
        $region71: #{tpu_custom_call.1} parent=47 // pred_region
          %v1176 = vld [vmem:[%s421] sm:$0x1]
          %v1177 = vld [vmem:[#allocation2] sm:$0x3]
          %v1179 = vlaneseq
          %v1180 = vshrl.u32 %v1179, 7
          %v1181 = vsub.s32 0, %v1180
          %v1182 = vrot.slane %v1176, %v1181
          %v1184 = vadd.f32 %v1177, %v1182
          %v1185 = vld [vmem:[#allocation3] sm:$0x3]
          %v1186 = vadd.f32 %v1185, %v1182
          %v1187 = vld [vmem:[%s2] sm:$0x3]
          %v1188 = vld [vmem:[#allocation9] sm:$0xff]
          %v1189 = vld [vmem:[#allocation9 + $0x8] sm:$0xff]
          %v1190 = vld [vmem:[#allocation9 + $0x10] sm:$0xff]
          %v1191 = vld [vmem:[#allocation9 + $0x18] sm:$0xff]
          %vm1192 = vcmask 261120
          %v1194 = vsel %vm1192, %v1187, 0
          %1196 = vmatprep.subr.mxu0 0.0
          %1197 = vmatpush1.msra.mxu0 %v1188
          %1198 = vmatprep.subr.mxu0 0.0
          %1199 = vmatpush1.msra.mxu0 %v1189
          %1200 = vmatprep.subr.mxu0 0.0
          %1201 = vmatpush1.msra.mxu0 %v1190
          %1202 = vmatprep.subr.mxu0 0.0
          %1203 = vmatpush1.msra.mxu0 %v1191
          %1204 = vmatprep.subr.mxu0 0.0
          %1205 = vmatpush1.msra.mxu0 0.0
          %1206 = vmatprep.subr.mxu0 0.0
          %1207 = vmatpush1.msra.mxu0 0.0
          %1208 = vmatprep.subr.mxu0 0.0
          %1209 = vmatpush1.msra.mxu0 0.0
          %1210 = vmatprep.subr.mxu0 0.0
          %1211 = vmatpush1.msra.mxu0 0.0
          %1212 = vmatprep.subr.mxu0 0.0
          %1213 = vmatpush1.msra.mxu0 0.0
          %1214 = vmatprep.subr.mxu0 0.0
          %1215 = vmatpush1.msra.mxu0 0.0
          %1216 = vmatprep.subr.mxu0 0.0
          %1217 = vmatpush1.msra.mxu0 0.0
          %1218 = vmatprep.subr.mxu0 0.0
          %1219 = vmatpush1.msra.mxu0 0.0
          %1220 = vmatprep.subr.mxu0 0.0
          %1221 = vmatpush1.msra.mxu0 0.0
          %1222 = vmatprep.subr.mxu0 0.0
          %1223 = vmatpush1.msra.mxu0 0.0
          %1224 = vmatprep.subr.mxu0 0.0
          %1225 = vmatpush1.msra.mxu0 0.0
          %1226 = vmatprep.subr.mxu0 0.0
          %1227 = vmatpush1.msra.mxu0 0.0
          %1228 = vmatprep.subr.mxu0 0.0
          %1229 = vmatpush1.msra.mxu0 0.0
          %1230 = vmatprep.subr.mxu0 0.0
          %1231 = vmatpush1.msra.mxu0 0.0
          %1232 = vmatprep.subr.mxu0 0.0
          %1233 = vmatpush1.msra.mxu0 0.0
          %1234 = vmatprep.subr.mxu0 0.0
          %1235 = vmatpush1.msra.mxu0 0.0
          %1236 = vmatprep.subr.mxu0 0.0
          %1237 = vmatpush1.msra.mxu0 0.0
          %1238 = vmatprep.subr.mxu0 0.0
          %1239 = vmatpush1.msra.mxu0 0.0
          %1240 = vmatprep.subr.mxu0 0.0
          %1241 = vmatpush1.msra.mxu0 0.0
          %1242 = vmatprep.subr.mxu0 0.0
          %1243 = vmatpush1.msra.mxu0 0.0
          %1244 = vmatprep.subr.mxu0 0.0
          %1245 = vmatpush1.msra.mxu0 0.0
          %1246 = vmatprep.subr.mxu0 0.0
          %1247 = vmatpush1.msra.mxu0 0.0
          %1248 = vmatprep.subr.mxu0 0.0
          %1249 = vmatpush1.msra.mxu0 0.0
          %1250 = vmatprep.subr.mxu0 0.0
          %1251 = vmatpush1.msra.mxu0 0.0
          %1252 = vmatprep.subr.mxu0 0.0
          %1253 = vmatpush1.msra.mxu0 0.0
          %1254 = vmatprep.subr.mxu0 0.0
          %1255 = vmatpush1.msra.mxu0 0.0
          %1256 = vmatprep.subr.mxu0 0.0
          %1257 = vmatpush1.msra.mxu0 0.0
          %1258 = vmatprep.subr.mxu0 0.0
          %1259 = vmatpush1.msra.mxu0 0.0
          %1260 = vmatprep.mubr.f32.mxu0 0.0
          %1261 = vmatmul.mubr.f32.gmra.mrb[0].mxu0 %v1194
          %v1262 = vpop.f32.mrb[0].mxu0
          %v1263 = vadd.f32 0.0, %v1262
          %v1264 = vpop.f32.mrb[0].mxu0
          %1265 = vdwg.mxu0
          %v1266 = vld [vmem:[%s3] sm:$0x3]
          %v1268 = vsel %vm1192, %v1266, 0
          %1270 = vmatprep.subr.mxu0 0.0
          %1271 = vmatpush1.msra.mxu0 %v1188
          %1272 = vmatprep.subr.mxu0 0.0
          %1273 = vmatpush1.msra.mxu0 %v1189
          %1274 = vmatprep.subr.mxu0 0.0
          %1275 = vmatpush1.msra.mxu0 %v1190
          %1276 = vmatprep.subr.mxu0 0.0
          %1277 = vmatpush1.msra.mxu0 %v1191
          %1278 = vmatprep.subr.mxu0 0.0
          %1279 = vmatpush1.msra.mxu0 0.0
          %1280 = vmatprep.subr.mxu0 0.0
          %1281 = vmatpush1.msra.mxu0 0.0
          %1282 = vmatprep.subr.mxu0 0.0
          %1283 = vmatpush1.msra.mxu0 0.0
          %1284 = vmatprep.subr.mxu0 0.0
          %1285 = vmatpush1.msra.mxu0 0.0
          %1286 = vmatprep.subr.mxu0 0.0
          %1287 = vmatpush1.msra.mxu0 0.0
          %1288 = vmatprep.subr.mxu0 0.0
          %1289 = vmatpush1.msra.mxu0 0.0
          %1290 = vmatprep.subr.mxu0 0.0
          %1291 = vmatpush1.msra.mxu0 0.0
          %1292 = vmatprep.subr.mxu0 0.0
          %1293 = vmatpush1.msra.mxu0 0.0
          %1294 = vmatprep.subr.mxu0 0.0
          %1295 = vmatpush1.msra.mxu0 0.0
          %1296 = vmatprep.subr.mxu0 0.0
          %1297 = vmatpush1.msra.mxu0 0.0
          %1298 = vmatprep.subr.mxu0 0.0
          %1299 = vmatpush1.msra.mxu0 0.0
          %1300 = vmatprep.subr.mxu0 0.0
          %1301 = vmatpush1.msra.mxu0 0.0
          %1302 = vmatprep.subr.mxu0 0.0
          %1303 = vmatpush1.msra.mxu0 0.0
          %1304 = vmatprep.subr.mxu0 0.0
          %1305 = vmatpush1.msra.mxu0 0.0
          %1306 = vmatprep.subr.mxu0 0.0
          %1307 = vmatpush1.msra.mxu0 0.0
          %1308 = vmatprep.subr.mxu0 0.0
          %1309 = vmatpush1.msra.mxu0 0.0
          %1310 = vmatprep.subr.mxu0 0.0
          %1311 = vmatpush1.msra.mxu0 0.0
          %1312 = vmatprep.subr.mxu0 0.0
          %1313 = vmatpush1.msra.mxu0 0.0
          %1314 = vmatprep.subr.mxu0 0.0
          %1315 = vmatpush1.msra.mxu0 0.0
          %1316 = vmatprep.subr.mxu0 0.0
          %1317 = vmatpush1.msra.mxu0 0.0
          %1318 = vmatprep.subr.mxu0 0.0
          %1319 = vmatpush1.msra.mxu0 0.0
          %1320 = vmatprep.subr.mxu0 0.0
          %1321 = vmatpush1.msra.mxu0 0.0
          %1322 = vmatprep.subr.mxu0 0.0
          %1323 = vmatpush1.msra.mxu0 0.0
          %1324 = vmatprep.subr.mxu0 0.0
          %1325 = vmatpush1.msra.mxu0 0.0
          %1326 = vmatprep.subr.mxu0 0.0
          %1327 = vmatpush1.msra.mxu0 0.0
          %1328 = vmatprep.subr.mxu0 0.0
          %1329 = vmatpush1.msra.mxu0 0.0
          %1330 = vmatprep.subr.mxu0 0.0
          %1331 = vmatpush1.msra.mxu0 0.0
          %1332 = vmatprep.subr.mxu0 0.0
          %1333 = vmatpush1.msra.mxu0 0.0
          %1334 = vmatprep.mubr.f32.mxu0 0.0
          %1335 = vmatmul.mubr.f32.gmra.mrb[0].mxu0 %v1268
          %v1336 = vpop.f32.mrb[0].mxu0
          %v1337 = vadd.f32 0.0, %v1336
          %v1338 = vpop.f32.mrb[0].mxu0
          %1339 = vdwg.mxu0
          %v1340 = vmul.f32 %v1184, %v1184
          %vm1341 = vcmask 1041408
          %v1342 = vsel %vm1341, %v1340, 0.0
          %1343 = vadd.xlane.f32.xlu0 %v1342
          %v1344 = vpop.xlane.xlu0 %1343
          %v1345 = vmul.f32 %v1186, %v1186
          %v1346 = vsel %vm1341, %v1345, 0.0
          %1347 = vadd.xlane.f32.xlu0 %v1346
          %v1348 = vpop.xlane.xlu0 %1347
          %v1349 = vmul.f32 %v1263, %v1263
          %v1350 = vsel %vm1341, %v1349, 0.0
          %1351 = vadd.xlane.f32.xlu0 %v1350
          %v1352 = vpop.xlane.xlu0 %1351
          %v1353 = vmul.f32 %v1337, %v1337
          %v1354 = vsel %vm1341, %v1353, 0.0
          %1355 = vadd.xlane.f32.xlu0 %v1354
          %v1356 = vpop.xlane.xlu0 %1355
          %v1357 = vmul.f32 %v1184, %v1263
          %v1358 = vsel %vm1341, %v1357, 0.0
          %1359 = vadd.xlane.f32.xlu0 %v1358
          %v1360 = vpop.xlane.xlu0 %1359
          %v1361 = vmul.f32 %v1186, %v1337
          %v1362 = vsel %vm1341, %v1361, 0.0
          %1363 = vadd.xlane.f32.xlu0 %v1362
          %v1364 = vpop.xlane.xlu0 %1363
          %v1365 = vmul.f32 %v1184, %v1186
          %v1366 = vsel %vm1341, %v1365, 0.0
          %1367 = vadd.xlane.f32.xlu0 %v1366
          %v1368 = vpop.xlane.xlu0 %1367
          %v1369 = vmul.f32 %v1184, %v1337
          %v1370 = vsel %vm1341, %v1369, 0.0
          %1371 = vadd.xlane.f32.xlu0 %v1370
          %v1372 = vpop.xlane.xlu0 %1371
          %v1373 = vmul.f32 %v1186, %v1263
          %v1374 = vsel %vm1341, %v1373, 0.0
          %1375 = vadd.xlane.f32.xlu0 %v1374
          %v1376 = vpop.xlane.xlu0 %1375
          %v1377 = vmul.f32 %v1263, %v1337
          %v1378 = vsel %vm1341, %v1377, 0.0
          %1379 = vadd.xlane.f32.xlu0 %v1378
          %v1380 = vpop.xlane.xlu0 %1379
          %v1382 = vlaneseq
          %v1383 = vand.u32 %v1382, 127
          %v1384 = vlaneseq
          %v1385 = vshrl.u32 %v1384, 7
          %v1386 = vsub.s32 %v1383, %v1385
          %v1387 = vrot.slane %v1344, %v1386
          %v1390 = vlaneseq
          %v1391 = vshrl.u32 %v1390, 7
          %v1392 = vsub.s32 %v1383, %v1391
          %v1393 = vrot.slane %v1348, %v1392
          %v1396 = vlaneseq
          %v1397 = vshrl.u32 %v1396, 7
          %v1398 = vsub.s32 %v1383, %v1397
          %v1399 = vrot.slane %v1352, %v1398
          %v1402 = vlaneseq
          %v1403 = vshrl.u32 %v1402, 7
          %v1404 = vsub.s32 %v1383, %v1403
          %v1405 = vrot.slane %v1356, %v1404
          %v1408 = vlaneseq
          %v1409 = vshrl.u32 %v1408, 7
          %v1410 = vsub.s32 %v1383, %v1409
          %v1411 = vrot.slane %v1360, %v1410
          %v1414 = vlaneseq
          %v1415 = vshrl.u32 %v1414, 7
          %v1416 = vsub.s32 %v1383, %v1415
          %v1417 = vrot.slane %v1364, %v1416
          %v1420 = vlaneseq
          %v1421 = vshrl.u32 %v1420, 7
          %v1422 = vsub.s32 %v1383, %v1421
          %v1423 = vrot.slane %v1368, %v1422
          %v1426 = vlaneseq
          %v1427 = vshrl.u32 %v1426, 7
          %v1428 = vsub.s32 %v1383, %v1427
          %v1429 = vrot.slane %v1372, %v1428
          %v1432 = vlaneseq
          %v1433 = vshrl.u32 %v1432, 7
          %v1434 = vsub.s32 %v1383, %v1433
          %v1435 = vrot.slane %v1376, %v1434
          %v1438 = vlaneseq
          %v1439 = vshrl.u32 %v1438, 7
          %v1440 = vsub.s32 %v1383, %v1439
          %v1441 = vrot.slane %v1380, %v1440
          %vm1443 = vcmask 1040384
          %v1444 = vsel %vm1443, %v1387, %v1393
          %v1445 = vsel %vm1341, %v1444, %v1399
          %vm1446 = vcmask 1042432
          %v1447 = vsel %vm1446, %v1445, %v1405
          %vm1448 = vcmask 1043456
          %v1449 = vsel %vm1448, %v1447, %v1411
          %vm1450 = vcmask 1044480
          %v1451 = vsel %vm1450, %v1449, %v1417
          %vm1452 = vcmask 1045504
          %v1453 = vsel %vm1452, %v1451, %v1423
          %vm1454 = vcmask 1046528
          %v1455 = vsel %vm1454, %v1453, %v1429
          %v1456 = vsel %vm1443, %v1435, %v1441
          %vm1457 = vcmask 15360
          %1458 = vst.msk [vmem:[%s426] sm:$0xff] %vm1457, %v1455
          %vm1459 = vcmask 9216
          %1460 = vst.msk [vmem:[%s426 + $0x8] sm:$0x3] %vm1459, %v1456
        $region72: #{tpu_custom_call.1} parent=47 // pred_fallthru
          _
        %p1461 = scmp.lt.s32.totalorder %s29, 1
        %s1462 = scalar_select %p1461, %s29, 1
        %s1463 = smul.addr %s1462, 2
        %s1464 = smul.addr %s1463, 8
        %s1465 = scalar_lea.vmem %s7, %s1464
        // Predicated region
        $region73: #{tpu_custom_call.1} parent=47 // pred_check
          %p1466 = pneg %p229
        $region74: #{tpu_custom_call.1} parent=47 // pred_check_branch
          %1468 = sbr.rel (%p1466) target = $region76
        $region75: #{tpu_custom_call.1} parent=47 // pred_region
          _
        $region76: #{tpu_custom_call.1} parent=47 // pred_fallthru
          _
      $region48: #{tpu_custom_call.1} parent=5 // pred_fallthru
        _
      %p1469 = scmp.le.s32.totalorder 2, %s20
      // Predicated region
      $region77: #{tpu_custom_call.1} parent=5 // pred_check
        %p1470 = pneg %p1469
      $region78: #{tpu_custom_call.1} parent=5 // pred_check_branch
        %1472 = sbr.rel (%p1470) target = $region80
      $region79: #{tpu_custom_call.1} parent=5 // pred_region
        %s1473 = ssub.s32 %s20, 2
        // Predicated region
        $region81: #{tpu_custom_call.1} parent=79 // pred_check
          %p1474 = pneg %p235
        $region82: #{tpu_custom_call.1} parent=79 // pred_check_branch
          %1476 = sbr.rel (%p1474) target = $region84
        $region83: #{tpu_custom_call.1} parent=79 // pred_region
          %p1477 = scmp.lt.s32.totalorder %s31, 1
          %s1478 = scalar_select %p1477, %s31, 1
          %s1479 = smul.addr %s1478, 2
          %s1480 = smul.addr %s1479, 8
          %s1481 = scalar_lea.vmem %s7, %s1480
        $region84: #{tpu_custom_call.1} parent=79 // pred_fallthru
          _
      $region80: #{tpu_custom_call.1} parent=5 // pred_fallthru
        _
    $region6: #{tpu_custom_call.1} parent=1 // loop_footer
      %s24 = sadd.s32 1, %s20
    $region7: #{tpu_custom_call.1} parent=1 // loop_footer_branch
      %19 = sbr.rel target = $region3
    $region8: #{tpu_custom_call.1} parent=1 // loop_exit
      _
    %1482 = vsyncpa [#allocation5], 1
    %s1483 = scalar_lea.sflag [#allocation5], 1
    %1484 = vsyncpa %s1483, 1
    %1485 = vsyncpa [#allocation7], 1
    %s1486 = scalar_lea.sflag [#allocation7], 1
    %1487 = vsyncpa %s1486, 1
    %1488 = vsyncpa [#allocation10], 1

</llo_original>
